<compile_context>
chip_gen: v7x
topology: tpu7x:2x2x1
jax: 0.10.0
libtpu: 0.0.40
codegen_flags: <defaults>
</compile_context>

<pallas_src>
import jax
import jax.numpy as jnp
from jax.experimental import pallas as pl
from jax.experimental.pallas import tpu as pltpu

# --- model hyper-parameters (synthetic; config .pth unavailable) ---
N_EMBD = 32
N_HEAD = 4
BLOCK_SIZE = 8            # sequence length T
HEAD_SIZE = N_EMBD // N_HEAD
DROPOUT = 0.0             # eval-mode / identity
LN_EPS = 1e-5
SCALE = float(N_EMBD) ** -0.5      # reference scales by n_embd**-0.5
MXU_DTYPE = jnp.bfloat16           # MXU-operand dtype (keep f32 elementwise math)
MASK_NEG = -1e30                   # large finite negative (avoids inf-inf edge cases)


def _layernorm(v, gamma, beta):
    # v: (N, C) f32; gamma/beta: (1, C) f32
    mu = jnp.mean(v, axis=-1, keepdims=True)
    var = jnp.mean((v - mu) ** 2, axis=-1, keepdims=True)
    return (v - mu) * jax.lax.rsqrt(var + LN_EPS) * gamma + beta


def block_kernel(x_ref, vecs_ref, b1_ref, mask_ref,
                 wqkv_ref, wproj_ref, w1_ref, w2_ref, o_ref):
    # x_ref: (N, C) flattened batch rows (N = batch_block * T), f32
    x = x_ref[...].astype(jnp.float32)                     # (N, C)
    N = x.shape[0]
    T = BLOCK_SIZE
    C = N_EMBD
    HS = HEAD_SIZE
    BB = N // T                                            # batch elements in this block

    # packed per-channel vectors: [ln1_g, ln1_b, ln2_g, ln2_b, b_proj, b_ffn2]
    ln1_g = vecs_ref[0:1, :]
    ln1_b = vecs_ref[1:2, :]
    ln2_g = vecs_ref[2:3, :]
    ln2_b = vecs_ref[3:4, :]
    b_proj = vecs_ref[4:5, :]
    b_ff2 = vecs_ref[5:6, :]

    # ---------------- self-attention branch: x + proj(heads(ln1(x))) ----------------
    h = _layernorm(x, ln1_g, ln1_b)                        # (N, C) f32

    # Fused QKV: ONE full-width bf16 MXU matmul, f32 accumulation.
    qkv = jnp.dot(h.astype(MXU_DTYPE), wqkv_ref[...],
                  preferred_element_type=jnp.float32)      # (N, 3C) f32
    qkv = qkv.reshape(BB, T, 3 * C)                        # leading-dim split only

    mask = mask_ref[...][None]                             # (1, T, T) additive mask

    def bmm(a, b, ca, cb):                                 # batched matmul, leading batch dim
        return jax.lax.dot_general(
            a, b, dimension_numbers=(((ca,), (cb,)), ((0,), (0,))),
            preferred_element_type=jnp.float32)

    # Per-head attention.  The (T, hs) / (T, T) tiles are tiny by construction;
    # heads are static lane slices of the fused qkv result (no weight replication).
    head_outs = []
    for hh in range(N_HEAD):
        lo, hi = hh * HS, (hh + 1) * HS
        q_h = qkv[:, :, lo:hi]                             # (BB, T, hs)
        k_h = qkv[:, :, C + lo:C + hi]                     # (BB, T, hs)
        v_h = qkv[:, :, 2 * C + lo:2 * C + hi]             # (BB, T, hs)

        s = bmm(q_h, k_h, 2, 2) * SCALE + mask             # (BB, T, T), k-transpose folded in
        m = jnp.max(s, axis=-1, keepdims=True)
        e = jnp.exp(s - m)
        denom = jnp.sum(e, axis=-1, keepdims=True)
        p = e * pl.reciprocal(denom, approx=False)         # EUP, off the VALU path
        # attention dropout: eval-mode identity
        head_outs.append(bmm(p, v_h, 2, 1))                # (BB, T, hs)

    # head concat -> (N, C) slab; output projection is ONE full-width matmul.
    att = jnp.concatenate(head_outs, axis=-1).reshape(N, C)
    sa = jnp.dot(att.astype(MXU_DTYPE), wproj_ref[...],
                 preferred_element_type=jnp.float32) + b_proj
    # projection dropout: eval-mode identity

    x1 = x + sa                                            # residual 1

    # ---------------- feed-forward branch: x1 + ffwd(ln2(x1)) ----------------
    h2 = _layernorm(x1, ln2_g, ln2_b)
    ff = jnp.dot(h2.astype(MXU_DTYPE), w1_ref[...],
                 preferred_element_type=jnp.float32) + b1_ref[...]
    ff = jnp.maximum(ff, 0.0)                              # ReLU
    ff = jnp.dot(ff.astype(MXU_DTYPE), w2_ref[...],
                 preferred_element_type=jnp.float32) + b_ff2
    # FFN dropout: eval-mode identity

    o_ref[...] = (x1 + ff).astype(o_ref.dtype)             # residual 2


def transformer_block(x, params, *, batch_block=None):
    """x: (B, T, C) float32. params: dict of f32 weights (see init_params).

    batch_block: batch elements per grid step.  Default = whole batch (single grid
    step; best on single-TC v5e/v6e and at small B).  On v7x pass batch_block=B//2
    ONLY when the per-core step is several hundred rows, so the "parallel" axis can
    be sharded across both TensorCores without being overhead-dominated.
    """
    B, T, C = x.shape
    assert T == BLOCK_SIZE and C == N_EMBD
    if batch_block is None:
        batch_block = B
    assert B % batch_block == 0
    grid = (B // batch_block,)
    N = batch_block * T
    H4 = 4 * C

    # Flatten batch*seq into the sublane axis (free reshape in XLA).
    xf = x.reshape(B * T, C)

    # --- wrapper-side (free XLA) parameter packing ---
    # Fused QKV weight: Wq | Wk | Wv packed column-wise, stored bf16 in HBM.
    wqkv = jnp.concatenate([params["wq"], params["wk"], params["wv"]],
                           axis=1).astype(MXU_DTYPE)                 # (C, 3C)
    wproj = params["wproj"].astype(MXU_DTYPE)                        # (C, C)
    w1 = params["w1"].astype(MXU_DTYPE)                              # (C, 4C)
    w2 = params["w2"].astype(MXU_DTYPE)                              # (4C, C)
    # small per-channel f32 vectors packed into one (6, C) slab
    vecs = jnp.concatenate(
        [params["ln1_g"], params["ln1_b"],
         params["ln2_g"], params["ln2_b"],
         params["bproj"], params["b2"]], axis=0)                     # (6, C)
    # additive causal mask: 0 on/below diagonal, -1e30 above
    tril = jnp.tril(jnp.ones((T, T), bool))
    mask = jnp.where(tril, 0.0, MASK_NEG).astype(jnp.float32)        # (T, T)

    def const_spec(shape):
        return pl.BlockSpec(shape, lambda i: (0,) * len(shape))

    fn = pl.pallas_call(
        block_kernel,
        out_shape=jax.ShapeDtypeStruct((B * T, C), x.dtype),
        grid_spec=pltpu.PrefetchScalarGridSpec(
            num_scalar_prefetch=0,
            grid=grid,
            in_specs=[
                pl.BlockSpec((N, C), lambda i: (i, 0)),              # x (flattened)
                const_spec((6, C)),                                  # ln params + biases
                const_spec((1, H4)),                                 # b1
                const_spec((T, T)),                                  # additive causal mask
                const_spec((C, 3 * C)),                              # fused Wqkv (bf16)
                const_spec((C, C)),                                  # Wproj (bf16)
                const_spec((C, H4)),                                 # W1 (bf16)
                const_spec((H4, C)),                                 # W2 (bf16)
            ],
            out_specs=pl.BlockSpec((N, C), lambda i: (i, 0)),
        ),
        compiler_params=pltpu.CompilerParams(
            dimension_semantics=("parallel",)),
    )
    out = fn(xf, vecs, params["b1"], mask, wqkv, wproj, w1, w2)
    return out.reshape(B, T, C)


def init_params(key, C):
    H4 = 4 * C
    ks = jax.random.split(key, 8)
    scale = 0.02
    return {
        "ln1_g": jnp.ones((1, C), jnp.float32),
        "ln1_b": jnp.zeros((1, C), jnp.float32),
        "wq": scale * jax.random.normal(ks[0], (C, C), jnp.float32),
        "wk": scale * jax.random.normal(ks[1], (C, C), jnp.float32),
        "wv": scale * jax.random.normal(ks[2], (C, C), jnp.float32),
        "wproj": scale * jax.random.normal(ks[3], (C, C), jnp.float32),
        "bproj": scale * jax.random.normal(ks[4], (1, C), jnp.float32),
        "ln2_g": jnp.ones((1, C), jnp.float32),
        "ln2_b": jnp.zeros((1, C), jnp.float32),
        "w1": scale * jax.random.normal(ks[5], (C, H4), jnp.float32),
        "b1": jnp.zeros((1, H4), jnp.float32),
        "w2": scale * jax.random.normal(ks[6], (H4, C), jnp.float32),
        "b2": jnp.zeros((1, C), jnp.float32),
    }


def reference_block(x, p):
    """Pure-JAX f32 reference mirroring the PyTorch forward (eval mode)."""
    B, T, C = x.shape

    def ln(v, g, b):
        mu = jnp.mean(v, axis=-1, keepdims=True)
        var = jnp.mean((v - mu) ** 2, axis=-1, keepdims=True)
        return (v - mu) / jnp.sqrt(var + LN_EPS) * g[0] + b[0]

    h = ln(x, p["ln1_g"], p["ln1_b"])
    q = h @ p["wq"]
    k = h @ p["wk"]
    v = h @ p["wv"]
    mask = jnp.tril(jnp.ones((T, T), bool))
    outs = []
    for hh in range(N_HEAD):
        s = slice(hh * HEAD_SIZE, (hh + 1) * HEAD_SIZE)
        wei = jnp.einsum("btd,bsd->bts", q[..., s], k[..., s]) * (C ** -0.5)
        wei = jnp.where(mask, wei, -jnp.inf)
        wei = jax.nn.softmax(wei, axis=-1)
        outs.append(jnp.einsum("bts,bsd->btd", wei, v[..., s]))
    sa = jnp.concatenate(outs, axis=-1) @ p["wproj"] + p["bproj"][0]
    x1 = x + sa
    h2 = ln(x1, p["ln2_g"], p["ln2_b"])
    ff = jnp.maximum(h2 @ p["w1"] + p["b1"][0], 0.0) @ p["w2"] + p["b2"][0]
    return x1 + ff


if __name__ == "__main__":
    key = jax.random.PRNGKey(0)
    kx, kp = jax.random.split(key)

    B, T, C = 2, BLOCK_SIZE, N_EMBD
    x = jax.random.normal(kx, (B, T, C), jnp.float32)
    params = init_params(kp, C)

    out = jax.block_until_ready(transformer_block(x, params))
    ref = reference_block(x, params)

    assert out.shape == (B, T, C)
    err = jnp.max(jnp.abs(out - ref))
    # tolerance reflects bf16 MXU operands (f32 accumulation); reference is pure f32
    assert jnp.allclose(out, ref, atol=5e-3, rtol=5e-3), f"max abs err {err}"
    print("KERNEL_OK")
</pallas_src>

<mosaic_0001>
module attributes {stable_mosaic.version = 11 : i64} {
  func.func @block_kernel(%arg0: i32, %arg1: memref<16x32xf32, #tpu.memory_space<vmem>>, %arg2: memref<6x32xf32, #tpu.memory_space<vmem>>, %arg3: memref<1x128xf32, #tpu.memory_space<vmem>>, %arg4: memref<8x8xf32, #tpu.memory_space<vmem>>, %arg5: memref<32x96xbf16, #tpu.memory_space<vmem>>, %arg6: memref<32x32xbf16, #tpu.memory_space<vmem>>, %arg7: memref<32x128xbf16, #tpu.memory_space<vmem>>, %arg8: memref<128x32xbf16, #tpu.memory_space<vmem>>, %arg9: memref<16x32xf32, #tpu.memory_space<vmem>>) attributes {dimension_semantics = [#tpu.dimension_semantics<parallel>], iteration_bounds = array<i64: 1>, scalar_prefetch = 0 : i64, scratch_operands = 0 : i64, tpu.core_type = #tpu.core_type<tc>, window_params = [{transform_indices = @transform_0, window_bounds = array<i64: 16, 32>}, {pipeline_mode = #tpu.pipeline_mode<synchronous>, transform_indices = @transform_1, window_bounds = array<i64: 6, 32>}, {pipeline_mode = #tpu.pipeline_mode<synchronous>, transform_indices = @transform_2, window_bounds = array<i64: 1, 128>}, {pipeline_mode = #tpu.pipeline_mode<synchronous>, transform_indices = @transform_3, window_bounds = array<i64: 8, 8>}, {pipeline_mode = #tpu.pipeline_mode<synchronous>, transform_indices = @transform_4, window_bounds = array<i64: 32, 96>}, {pipeline_mode = #tpu.pipeline_mode<synchronous>, transform_indices = @transform_5, window_bounds = array<i64: 32, 32>}, {pipeline_mode = #tpu.pipeline_mode<synchronous>, transform_indices = @transform_6, window_bounds = array<i64: 32, 128>}, {pipeline_mode = #tpu.pipeline_mode<synchronous>, transform_indices = @transform_7, window_bounds = array<i64: 128, 32>}, {transform_indices = @transform_8, window_bounds = array<i64: 16, 32>}]} {
    %c0 = arith.constant 0 : index
    %c0_0 = arith.constant 0 : index
    %0 = vector.load %arg1[%c0, %c0_0] : memref<16x32xf32, #tpu.memory_space<vmem>>, vector<16x32xf32>
    %c0_1 = arith.constant 0 : index
    %c0_2 = arith.constant 0 : index
    %1 = vector.load %arg2[%c0_1, %c0_2] : memref<6x32xf32, #tpu.memory_space<vmem>>, vector<1x32xf32>
    %c1 = arith.constant 1 : index
    %c0_3 = arith.constant 0 : index
    %2 = vector.load %arg2[%c1, %c0_3] : memref<6x32xf32, #tpu.memory_space<vmem>>, vector<1x32xf32>
    %c2 = arith.constant 2 : index
    %c0_4 = arith.constant 0 : index
    %3 = vector.load %arg2[%c2, %c0_4] : memref<6x32xf32, #tpu.memory_space<vmem>>, vector<1x32xf32>
    %c3 = arith.constant 3 : index
    %c0_5 = arith.constant 0 : index
    %4 = vector.load %arg2[%c3, %c0_5] : memref<6x32xf32, #tpu.memory_space<vmem>>, vector<1x32xf32>
    %c4 = arith.constant 4 : index
    %c0_6 = arith.constant 0 : index
    %5 = vector.load %arg2[%c4, %c0_6] : memref<6x32xf32, #tpu.memory_space<vmem>>, vector<1x32xf32>
    %c5 = arith.constant 5 : index
    %c0_7 = arith.constant 0 : index
    %6 = vector.load %arg2[%c5, %c0_7] : memref<6x32xf32, #tpu.memory_space<vmem>>, vector<1x32xf32>
    %cst = arith.constant dense<0.000000e+00> : vector<16xf32>
    %7 = vector.multi_reduction <add>, %0, %cst [1] : vector<16x32xf32> to vector<16xf32>
    %8 = vector.shape_cast %7 : vector<16xf32> to vector<16x1xf32>
    %cst_8 = arith.constant 3.200000e+01 : f32
    %9 = vector.broadcast %cst_8 : f32 to vector<16x1xf32>
    %10 = arith.divf %8, %9 : vector<16x1xf32>
    %11 = vector.broadcast %10 : vector<16x1xf32> to vector<16x32xf32>
    %12 = arith.subf %0, %11 : vector<16x32xf32>
    %13 = arith.mulf %12, %12 : vector<16x32xf32>
    %cst_9 = arith.constant dense<0.000000e+00> : vector<16xf32>
    %14 = vector.multi_reduction <add>, %13, %cst_9 [1] : vector<16x32xf32> to vector<16xf32>
    %15 = vector.shape_cast %14 : vector<16xf32> to vector<16x1xf32>
    %cst_10 = arith.constant 3.200000e+01 : f32
    %16 = vector.broadcast %cst_10 : f32 to vector<16x1xf32>
    %17 = arith.divf %15, %16 : vector<16x1xf32>
    %18 = vector.broadcast %10 : vector<16x1xf32> to vector<16x32xf32>
    %19 = arith.subf %0, %18 : vector<16x32xf32>
    %cst_11 = arith.constant 9.99999974E-6 : f32
    %20 = vector.broadcast %cst_11 : f32 to vector<16x1xf32>
    %21 = arith.addf %17, %20 : vector<16x1xf32>
    %22 = math.rsqrt %21 : vector<16x1xf32>
    %23 = vector.broadcast %22 : vector<16x1xf32> to vector<16x32xf32>
    %24 = arith.mulf %19, %23 : vector<16x32xf32>
    %25 = vector.broadcast %1 : vector<1x32xf32> to vector<16x32xf32>
    %26 = arith.mulf %24, %25 : vector<16x32xf32>
    %27 = vector.broadcast %2 : vector<1x32xf32> to vector<16x32xf32>
    %28 = arith.addf %26, %27 : vector<16x32xf32>
    %29 = arith.truncf %28 : vector<16x32xf32> to vector<16x32xbf16>
    %c0_12 = arith.constant 0 : index
    %c0_13 = arith.constant 0 : index
    %30 = vector.load %arg5[%c0_12, %c0_13] : memref<32x96xbf16, #tpu.memory_space<vmem>>, vector<32x96xbf16>
    %cst_14 = arith.constant dense<0.000000e+00> : vector<16x96xf32>
    %31 = tpu.matmul %29, %30, %cst_14 {dimension_numbers = #tpu.dot_dimension_numbers<[1], [0], [0], [1], [0, 0, 1, 1], [], []>} : vector<16x32xbf16>, vector<32x96xbf16>, vector<16x96xf32> -> vector<16x96xf32>
    %32 = vector.shape_cast %31 : vector<16x96xf32> to vector<2x8x96xf32>
    %c0_15 = arith.constant 0 : index
    %c0_16 = arith.constant 0 : index
    %33 = vector.load %arg4[%c0_15, %c0_16] : memref<8x8xf32, #tpu.memory_space<vmem>>, vector<8x8xf32>
    %34 = vector.shape_cast %33 : vector<8x8xf32> to vector<1x8x8xf32>
    %35 = vector.extract_strided_slice %32 {offsets = [0, 0, 0], sizes = [2, 8, 8], strides = [1, 1, 1]} : vector<2x8x96xf32> to vector<2x8x8xf32>
    %36 = vector.extract_strided_slice %32 {offsets = [0, 0, 32], sizes = [2, 8, 8], strides = [1, 1, 1]} : vector<2x8x96xf32> to vector<2x8x8xf32>
    %37 = vector.extract_strided_slice %32 {offsets = [0, 0, 64], sizes = [2, 8, 8], strides = [1, 1, 1]} : vector<2x8x96xf32> to vector<2x8x8xf32>
    %cst_17 = arith.constant dense<0.000000e+00> : vector<2x8x8xf32>
    %38 = tpu.matmul %35, %36, %cst_17 {dimension_numbers = #tpu.dot_dimension_numbers<[2], [2], [1], [1], [0, 0, 0, 1, 1, 1], [0], [0]>} : vector<2x8x8xf32>, vector<2x8x8xf32>, vector<2x8x8xf32> -> vector<2x8x8xf32>
    %cst_18 = arith.constant 0.176776692 : f32
    %39 = vector.broadcast %cst_18 : f32 to vector<2x8x8xf32>
    %40 = arith.mulf %38, %39 : vector<2x8x8xf32>
    %41 = vector.broadcast %34 : vector<1x8x8xf32> to vector<2x8x8xf32>
    %42 = arith.addf %40, %41 : vector<2x8x8xf32>
    %cst_19 = arith.constant dense<0xFF800000> : vector<2x8xf32>
    %43 = vector.multi_reduction <maximumf>, %42, %cst_19 [2] : vector<2x8x8xf32> to vector<2x8xf32>
    %44 = vector.shape_cast %43 : vector<2x8xf32> to vector<2x8x1xf32>
    %45 = vector.broadcast %44 : vector<2x8x1xf32> to vector<2x8x8xf32>
    %46 = arith.subf %42, %45 : vector<2x8x8xf32>
    %47 = math.exp %46 : vector<2x8x8xf32>
    %cst_20 = arith.constant dense<0.000000e+00> : vector<2x8xf32>
    %48 = vector.multi_reduction <add>, %47, %cst_20 [2] : vector<2x8x8xf32> to vector<2x8xf32>
    %49 = vector.shape_cast %48 : vector<2x8xf32> to vector<2x8x1xf32>
    %50 = tpu.reciprocal %49 : vector<2x8x1xf32> -> vector<2x8x1xf32>
    %51 = vector.broadcast %50 : vector<2x8x1xf32> to vector<2x8x8xf32>
    %52 = arith.mulf %47, %51 : vector<2x8x8xf32>
    %cst_21 = arith.constant dense<0.000000e+00> : vector<2x8x8xf32>
    %53 = tpu.matmul %52, %37, %cst_21 {dimension_numbers = #tpu.dot_dimension_numbers<[2], [1], [1], [2], [0, 0, 0, 1, 1, 2], [0], [0]>} : vector<2x8x8xf32>, vector<2x8x8xf32>, vector<2x8x8xf32> -> vector<2x8x8xf32>
    %54 = vector.extract_strided_slice %32 {offsets = [0, 0, 8], sizes = [2, 8, 8], strides = [1, 1, 1]} : vector<2x8x96xf32> to vector<2x8x8xf32>
    %55 = vector.extract_strided_slice %32 {offsets = [0, 0, 40], sizes = [2, 8, 8], strides = [1, 1, 1]} : vector<2x8x96xf32> to vector<2x8x8xf32>
    %56 = vector.extract_strided_slice %32 {offsets = [0, 0, 72], sizes = [2, 8, 8], strides = [1, 1, 1]} : vector<2x8x96xf32> to vector<2x8x8xf32>
    %cst_22 = arith.constant dense<0.000000e+00> : vector<2x8x8xf32>
    %57 = tpu.matmul %54, %55, %cst_22 {dimension_numbers = #tpu.dot_dimension_numbers<[2], [2], [1], [1], [0, 0, 0, 1, 1, 1], [0], [0]>} : vector<2x8x8xf32>, vector<2x8x8xf32>, vector<2x8x8xf32> -> vector<2x8x8xf32>
    %cst_23 = arith.constant 0.176776692 : f32
    %58 = vector.broadcast %cst_23 : f32 to vector<2x8x8xf32>
    %59 = arith.mulf %57, %58 : vector<2x8x8xf32>
    %60 = vector.broadcast %34 : vector<1x8x8xf32> to vector<2x8x8xf32>
    %61 = arith.addf %59, %60 : vector<2x8x8xf32>
    %cst_24 = arith.constant dense<0xFF800000> : vector<2x8xf32>
    %62 = vector.multi_reduction <maximumf>, %61, %cst_24 [2] : vector<2x8x8xf32> to vector<2x8xf32>
    %63 = vector.shape_cast %62 : vector<2x8xf32> to vector<2x8x1xf32>
    %64 = vector.broadcast %63 : vector<2x8x1xf32> to vector<2x8x8xf32>
    %65 = arith.subf %61, %64 : vector<2x8x8xf32>
    %66 = math.exp %65 : vector<2x8x8xf32>
    %cst_25 = arith.constant dense<0.000000e+00> : vector<2x8xf32>
    %67 = vector.multi_reduction <add>, %66, %cst_25 [2] : vector<2x8x8xf32> to vector<2x8xf32>
    %68 = vector.shape_cast %67 : vector<2x8xf32> to vector<2x8x1xf32>
    %69 = tpu.reciprocal %68 : vector<2x8x1xf32> -> vector<2x8x1xf32>
    %70 = vector.broadcast %69 : vector<2x8x1xf32> to vector<2x8x8xf32>
    %71 = arith.mulf %66, %70 : vector<2x8x8xf32>
    %cst_26 = arith.constant dense<0.000000e+00> : vector<2x8x8xf32>
    %72 = tpu.matmul %71, %56, %cst_26 {dimension_numbers = #tpu.dot_dimension_numbers<[2], [1], [1], [2], [0, 0, 0, 1, 1, 2], [0], [0]>} : vector<2x8x8xf32>, vector<2x8x8xf32>, vector<2x8x8xf32> -> vector<2x8x8xf32>
    %73 = vector.extract_strided_slice %32 {offsets = [0, 0, 16], sizes = [2, 8, 8], strides = [1, 1, 1]} : vector<2x8x96xf32> to vector<2x8x8xf32>
    %74 = vector.extract_strided_slice %32 {offsets = [0, 0, 48], sizes = [2, 8, 8], strides = [1, 1, 1]} : vector<2x8x96xf32> to vector<2x8x8xf32>
    %75 = vector.extract_strided_slice %32 {offsets = [0, 0, 80], sizes = [2, 8, 8], strides = [1, 1, 1]} : vector<2x8x96xf32> to vector<2x8x8xf32>
    %cst_27 = arith.constant dense<0.000000e+00> : vector<2x8x8xf32>
    %76 = tpu.matmul %73, %74, %cst_27 {dimension_numbers = #tpu.dot_dimension_numbers<[2], [2], [1], [1], [0, 0, 0, 1, 1, 1], [0], [0]>} : vector<2x8x8xf32>, vector<2x8x8xf32>, vector<2x8x8xf32> -> vector<2x8x8xf32>
    %cst_28 = arith.constant 0.176776692 : f32
    %77 = vector.broadcast %cst_28 : f32 to vector<2x8x8xf32>
    %78 = arith.mulf %76, %77 : vector<2x8x8xf32>
    %79 = vector.broadcast %34 : vector<1x8x8xf32> to vector<2x8x8xf32>
    %80 = arith.addf %78, %79 : vector<2x8x8xf32>
    %cst_29 = arith.constant dense<0xFF800000> : vector<2x8xf32>
    %81 = vector.multi_reduction <maximumf>, %80, %cst_29 [2] : vector<2x8x8xf32> to vector<2x8xf32>
    %82 = vector.shape_cast %81 : vector<2x8xf32> to vector<2x8x1xf32>
    %83 = vector.broadcast %82 : vector<2x8x1xf32> to vector<2x8x8xf32>
    %84 = arith.subf %80, %83 : vector<2x8x8xf32>
    %85 = math.exp %84 : vector<2x8x8xf32>
    %cst_30 = arith.constant dense<0.000000e+00> : vector<2x8xf32>
    %86 = vector.multi_reduction <add>, %85, %cst_30 [2] : vector<2x8x8xf32> to vector<2x8xf32>
    %87 = vector.shape_cast %86 : vector<2x8xf32> to vector<2x8x1xf32>
    %88 = tpu.reciprocal %87 : vector<2x8x1xf32> -> vector<2x8x1xf32>
    %89 = vector.broadcast %88 : vector<2x8x1xf32> to vector<2x8x8xf32>
    %90 = arith.mulf %85, %89 : vector<2x8x8xf32>
    %cst_31 = arith.constant dense<0.000000e+00> : vector<2x8x8xf32>
    %91 = tpu.matmul %90, %75, %cst_31 {dimension_numbers = #tpu.dot_dimension_numbers<[2], [1], [1], [2], [0, 0, 0, 1, 1, 2], [0], [0]>} : vector<2x8x8xf32>, vector<2x8x8xf32>, vector<2x8x8xf32> -> vector<2x8x8xf32>
    %92 = vector.extract_strided_slice %32 {offsets = [0, 0, 24], sizes = [2, 8, 8], strides = [1, 1, 1]} : vector<2x8x96xf32> to vector<2x8x8xf32>
    %93 = vector.extract_strided_slice %32 {offsets = [0, 0, 56], sizes = [2, 8, 8], strides = [1, 1, 1]} : vector<2x8x96xf32> to vector<2x8x8xf32>
    %94 = vector.extract_strided_slice %32 {offsets = [0, 0, 88], sizes = [2, 8, 8], strides = [1, 1, 1]} : vector<2x8x96xf32> to vector<2x8x8xf32>
    %cst_32 = arith.constant dense<0.000000e+00> : vector<2x8x8xf32>
    %95 = tpu.matmul %92, %93, %cst_32 {dimension_numbers = #tpu.dot_dimension_numbers<[2], [2], [1], [1], [0, 0, 0, 1, 1, 1], [0], [0]>} : vector<2x8x8xf32>, vector<2x8x8xf32>, vector<2x8x8xf32> -> vector<2x8x8xf32>
    %cst_33 = arith.constant 0.176776692 : f32
    %96 = vector.broadcast %cst_33 : f32 to vector<2x8x8xf32>
    %97 = arith.mulf %95, %96 : vector<2x8x8xf32>
    %98 = vector.broadcast %34 : vector<1x8x8xf32> to vector<2x8x8xf32>
    %99 = arith.addf %97, %98 : vector<2x8x8xf32>
    %cst_34 = arith.constant dense<0xFF800000> : vector<2x8xf32>
    %100 = vector.multi_reduction <maximumf>, %99, %cst_34 [2] : vector<2x8x8xf32> to vector<2x8xf32>
    %101 = vector.shape_cast %100 : vector<2x8xf32> to vector<2x8x1xf32>
    %102 = vector.broadcast %101 : vector<2x8x1xf32> to vector<2x8x8xf32>
    %103 = arith.subf %99, %102 : vector<2x8x8xf32>
    %104 = math.exp %103 : vector<2x8x8xf32>
    %cst_35 = arith.constant dense<0.000000e+00> : vector<2x8xf32>
    %105 = vector.multi_reduction <add>, %104, %cst_35 [2] : vector<2x8x8xf32> to vector<2x8xf32>
    %106 = vector.shape_cast %105 : vector<2x8xf32> to vector<2x8x1xf32>
    %107 = tpu.reciprocal %106 : vector<2x8x1xf32> -> vector<2x8x1xf32>
    %108 = vector.broadcast %107 : vector<2x8x1xf32> to vector<2x8x8xf32>
    %109 = arith.mulf %104, %108 : vector<2x8x8xf32>
    %cst_36 = arith.constant dense<0.000000e+00> : vector<2x8x8xf32>
    %110 = tpu.matmul %109, %94, %cst_36 {dimension_numbers = #tpu.dot_dimension_numbers<[2], [1], [1], [2], [0, 0, 0, 1, 1, 2], [0], [0]>} : vector<2x8x8xf32>, vector<2x8x8xf32>, vector<2x8x8xf32> -> vector<2x8x8xf32>
    %111 = tpu.concatenate %53, %72, %91, %110 in 2 : vector<2x8x8xf32>, vector<2x8x8xf32>, vector<2x8x8xf32>, vector<2x8x8xf32> -> vector<2x8x32xf32>
    %112 = vector.shape_cast %111 : vector<2x8x32xf32> to vector<16x32xf32>
    %113 = arith.truncf %112 : vector<16x32xf32> to vector<16x32xbf16>
    %c0_37 = arith.constant 0 : index
    %c0_38 = arith.constant 0 : index
    %114 = vector.load %arg6[%c0_37, %c0_38] : memref<32x32xbf16, #tpu.memory_space<vmem>>, vector<32x32xbf16>
    %cst_39 = arith.constant dense<0.000000e+00> : vector<16x32xf32>
    %115 = tpu.matmul %113, %114, %cst_39 {dimension_numbers = #tpu.dot_dimension_numbers<[1], [0], [0], [1], [0, 0, 1, 1], [], []>} : vector<16x32xbf16>, vector<32x32xbf16>, vector<16x32xf32> -> vector<16x32xf32>
    %116 = vector.broadcast %5 : vector<1x32xf32> to vector<16x32xf32>
    %117 = arith.addf %115, %116 : vector<16x32xf32>
    %118 = arith.addf %0, %117 : vector<16x32xf32>
    %cst_40 = arith.constant dense<0.000000e+00> : vector<16xf32>
    %119 = vector.multi_reduction <add>, %118, %cst_40 [1] : vector<16x32xf32> to vector<16xf32>
    %120 = vector.shape_cast %119 : vector<16xf32> to vector<16x1xf32>
    %cst_41 = arith.constant 3.200000e+01 : f32
    %121 = vector.broadcast %cst_41 : f32 to vector<16x1xf32>
    %122 = arith.divf %120, %121 : vector<16x1xf32>
    %123 = vector.broadcast %122 : vector<16x1xf32> to vector<16x32xf32>
    %124 = arith.subf %118, %123 : vector<16x32xf32>
    %125 = arith.mulf %124, %124 : vector<16x32xf32>
    %cst_42 = arith.constant dense<0.000000e+00> : vector<16xf32>
    %126 = vector.multi_reduction <add>, %125, %cst_42 [1] : vector<16x32xf32> to vector<16xf32>
    %127 = vector.shape_cast %126 : vector<16xf32> to vector<16x1xf32>
    %cst_43 = arith.constant 3.200000e+01 : f32
    %128 = vector.broadcast %cst_43 : f32 to vector<16x1xf32>
    %129 = arith.divf %127, %128 : vector<16x1xf32>
    %130 = vector.broadcast %122 : vector<16x1xf32> to vector<16x32xf32>
    %131 = arith.subf %118, %130 : vector<16x32xf32>
    %cst_44 = arith.constant 9.99999974E-6 : f32
    %132 = vector.broadcast %cst_44 : f32 to vector<16x1xf32>
    %133 = arith.addf %129, %132 : vector<16x1xf32>
    %134 = math.rsqrt %133 : vector<16x1xf32>
    %135 = vector.broadcast %134 : vector<16x1xf32> to vector<16x32xf32>
    %136 = arith.mulf %131, %135 : vector<16x32xf32>
    %137 = vector.broadcast %3 : vector<1x32xf32> to vector<16x32xf32>
    %138 = arith.mulf %136, %137 : vector<16x32xf32>
    %139 = vector.broadcast %4 : vector<1x32xf32> to vector<16x32xf32>
    %140 = arith.addf %138, %139 : vector<16x32xf32>
    %141 = arith.truncf %140 : vector<16x32xf32> to vector<16x32xbf16>
    %c0_45 = arith.constant 0 : index
    %c0_46 = arith.constant 0 : index
    %142 = vector.load %arg7[%c0_45, %c0_46] : memref<32x128xbf16, #tpu.memory_space<vmem>>, vector<32x128xbf16>
    %cst_47 = arith.constant dense<0.000000e+00> : vector<16x128xf32>
    %143 = tpu.matmul %141, %142, %cst_47 {dimension_numbers = #tpu.dot_dimension_numbers<[1], [0], [0], [1], [0, 0, 1, 1], [], []>} : vector<16x32xbf16>, vector<32x128xbf16>, vector<16x128xf32> -> vector<16x128xf32>
    %c0_48 = arith.constant 0 : index
    %c0_49 = arith.constant 0 : index
    %144 = vector.load %arg3[%c0_48, %c0_49] : memref<1x128xf32, #tpu.memory_space<vmem>>, vector<1x128xf32>
    %145 = vector.broadcast %144 : vector<1x128xf32> to vector<16x128xf32>
    %146 = arith.addf %143, %145 : vector<16x128xf32>
    %cst_50 = arith.constant 0.000000e+00 : f32
    %147 = vector.broadcast %cst_50 : f32 to vector<16x128xf32>
    %148 = arith.maximumf %146, %147 : vector<16x128xf32>
    %149 = arith.truncf %148 : vector<16x128xf32> to vector<16x128xbf16>
    %c0_51 = arith.constant 0 : index
    %c0_52 = arith.constant 0 : index
    %150 = vector.load %arg8[%c0_51, %c0_52] : memref<128x32xbf16, #tpu.memory_space<vmem>>, vector<128x32xbf16>
    %cst_53 = arith.constant dense<0.000000e+00> : vector<16x32xf32>
    %151 = tpu.matmul %149, %150, %cst_53 {dimension_numbers = #tpu.dot_dimension_numbers<[1], [0], [0], [1], [0, 0, 1, 1], [], []>} : vector<16x128xbf16>, vector<128x32xbf16>, vector<16x32xf32> -> vector<16x32xf32>
    %152 = vector.broadcast %6 : vector<1x32xf32> to vector<16x32xf32>
    %153 = arith.addf %151, %152 : vector<16x32xf32>
    %154 = arith.addf %118, %153 : vector<16x32xf32>
    %c0_54 = arith.constant 0 : index
    %c0_55 = arith.constant 0 : index
    %155 = vector.load %arg9[%c0_54, %c0_55] : memref<16x32xf32, #tpu.memory_space<vmem>>, vector<16x32xf32>
    tpu.vector_store %arg9[%c0_54, %c0_55], %154 {strides = array<i32>} : memref<16x32xf32, #tpu.memory_space<vmem>>, vector<16x32xf32>,
    return
  }
  func.func @transform_0(%arg0: i32) -> (i32, i32) {
    %c0_i32 = arith.constant 0 : i32
    %c0_i32_0 = arith.constant 0 : i32
    return %arg0, %c0_i32 : i32, i32
  }
  func.func @transform_1(%arg0: i32) -> (i32, i32) {
    %c0_i32 = arith.constant 0 : i32
    %c0_i32_0 = arith.constant 0 : i32
    %c0_i32_1 = arith.constant 0 : i32
    return %c0_i32, %c0_i32_0 : i32, i32
  }
  func.func @transform_2(%arg0: i32) -> (i32, i32) {
    %c0_i32 = arith.constant 0 : i32
    %c0_i32_0 = arith.constant 0 : i32
    %c0_i32_1 = arith.constant 0 : i32
    return %c0_i32, %c0_i32_0 : i32, i32
  }
  func.func @transform_3(%arg0: i32) -> (i32, i32) {
    %c0_i32 = arith.constant 0 : i32
    %c0_i32_0 = arith.constant 0 : i32
    %c0_i32_1 = arith.constant 0 : i32
    return %c0_i32, %c0_i32_0 : i32, i32
  }
  func.func @transform_4(%arg0: i32) -> (i32, i32) {
    %c0_i32 = arith.constant 0 : i32
    %c0_i32_0 = arith.constant 0 : i32
    %c0_i32_1 = arith.constant 0 : i32
    return %c0_i32, %c0_i32_0 : i32, i32
  }
  func.func @transform_5(%arg0: i32) -> (i32, i32) {
    %c0_i32 = arith.constant 0 : i32
    %c0_i32_0 = arith.constant 0 : i32
    %c0_i32_1 = arith.constant 0 : i32
    return %c0_i32, %c0_i32_0 : i32, i32
  }
  func.func @transform_6(%arg0: i32) -> (i32, i32) {
    %c0_i32 = arith.constant 0 : i32
    %c0_i32_0 = arith.constant 0 : i32
    %c0_i32_1 = arith.constant 0 : i32
    return %c0_i32, %c0_i32_0 : i32, i32
  }
  func.func @transform_7(%arg0: i32) -> (i32, i32) {
    %c0_i32 = arith.constant 0 : i32
    %c0_i32_0 = arith.constant 0 : i32
    %c0_i32_1 = arith.constant 0 : i32
    return %c0_i32, %c0_i32_0 : i32, i32
  }
  func.func @transform_8(%arg0: i32) -> (i32, i32) {
    %c0_i32 = arith.constant 0 : i32
    %c0_i32_0 = arith.constant 0 : i32
    return %arg0, %c0_i32 : i32, i32
  }
}

</mosaic_0001>

<llo_original>
// kernel: tpu_custom_call.1
$region0: #{tpu_custom_call.1}
  #allocation0 [shape = 'u32[]', space=smem, size = 0x4, offset = 0x4, fixed_abs, tag = 'smem constant byte address 0x4 - core index']
  #allocation1 [shape = 'u32[144,128]{1,0:T(1,128)}', space=vmem, size = 0x12000, scoped, tag = 'internal scratch']
  %s0 = inlined_call_operand.vmem [shape: f32[16,32], index: 0, kind: input, shape index: {}]
  %s1 = inlined_call_operand.vmem [shape: f32[6,32], index: 1, kind: input, shape index: {}]
  %s2 = inlined_call_operand.vmem [shape: f32[1,128], index: 2, kind: input, shape index: {}]
  %s3 = inlined_call_operand.vmem [shape: f32[8,8], index: 3, kind: input, shape index: {}]
  %s4 = inlined_call_operand.vmem [shape: bf16[32,96], index: 4, kind: input, shape index: {}]
  %s5 = inlined_call_operand.vmem [shape: bf16[32,32], index: 5, kind: input, shape index: {}]
  %s6 = inlined_call_operand.vmem [shape: bf16[32,128], index: 6, kind: input, shape index: {}]
  %s7 = inlined_call_operand.vmem [shape: bf16[128,32], index: 7, kind: input, shape index: {}]
  %s8 = inlined_call_operand.hbm [shape: f32[16,32], index: 8, kind: output, shape index: {}]
  %s9 = sld [smem:[#allocation0]]
  $region42: #{tpu_custom_call.1} parent=0
    _
  %s11 = ssub.s32 1, %s9
  %s12 = scalar_select 0, %s11, %s9
  $region1: #{tpu_custom_call.1} parent=0
    #allocation2 [shape = 'u8[8192]{0}', space=vmem, size = 0x2000, scoped, tag = 'output window, operand 0, single buffered']
    #allocation3 [shape = 's32[1]{0}', space=sflag, size = 0x4, scoped, tag = 'scoped memory for tpu_custom_call.1']
    %13 = vsyncpa [#allocation3], 0
    // Predicated region
    $region2: #{tpu_custom_call.1} parent=1 // pred_check
      _
    $region3: #{tpu_custom_call.1} parent=1 // pred_check_branch
      %15 = sbr.rel (0) target = $region5
    $region4: #{tpu_custom_call.1} parent=1 // pred_region
      _
    $region5: #{tpu_custom_call.1} parent=1 // pred_fallthru
      _
    // Predicated region
    $region6: #{tpu_custom_call.1} parent=1 // pred_check
      _
    $region7: #{tpu_custom_call.1} parent=1 // pred_check_branch
      %17 = sbr.rel (0) target = $region9
    $region8: #{tpu_custom_call.1} parent=1 // pred_region
      _
    $region9: #{tpu_custom_call.1} parent=1 // pred_fallthru
      _
    // Predicated region
    $region10: #{tpu_custom_call.1} parent=1 // pred_check
      _
    $region11: #{tpu_custom_call.1} parent=1 // pred_check_branch
      %19 = sbr.rel (0) target = $region13
    $region12: #{tpu_custom_call.1} parent=1 // pred_region
      _
    $region13: #{tpu_custom_call.1} parent=1 // pred_fallthru
      _
    // Predicated region
    $region14: #{tpu_custom_call.1} parent=1 // pred_check
      _
    $region15: #{tpu_custom_call.1} parent=1 // pred_check_branch
      %21 = sbr.rel (0) target = $region17
    $region16: #{tpu_custom_call.1} parent=1 // pred_region
      _
    $region17: #{tpu_custom_call.1} parent=1 // pred_fallthru
      _
    // Predicated region
    $region18: #{tpu_custom_call.1} parent=1 // pred_check
      _
    $region19: #{tpu_custom_call.1} parent=1 // pred_check_branch
      %23 = sbr.rel (0) target = $region21
    $region20: #{tpu_custom_call.1} parent=1 // pred_region
      _
    $region21: #{tpu_custom_call.1} parent=1 // pred_fallthru
      _
    // Predicated region
    $region22: #{tpu_custom_call.1} parent=1 // pred_check
      _
    $region23: #{tpu_custom_call.1} parent=1 // pred_check_branch
      %25 = sbr.rel (0) target = $region25
    $region24: #{tpu_custom_call.1} parent=1 // pred_region
      _
    $region25: #{tpu_custom_call.1} parent=1 // pred_fallthru
      _
    // Predicated region
    $region26: #{tpu_custom_call.1} parent=1 // pred_check
      _
    $region27: #{tpu_custom_call.1} parent=1 // pred_check_branch
      %27 = sbr.rel (0) target = $region29
    $region28: #{tpu_custom_call.1} parent=1 // pred_region
      _
    $region29: #{tpu_custom_call.1} parent=1 // pred_fallthru
      _
    // Predicated region
    $region30: #{tpu_custom_call.1} parent=1 // pred_check
      _
    $region31: #{tpu_custom_call.1} parent=1 // pred_check_branch
      %29 = sbr.rel (0) target = $region33
    $region32: #{tpu_custom_call.1} parent=1 // pred_region
      _
    $region33: #{tpu_custom_call.1} parent=1 // pred_fallthru
      _
    %v31 = vld [vmem:[%s0] sm:$0xff]
    %v32 = vld [vmem:[%s0 + $0x8] sm:$0xff]
    %v33 = vld [vmem:[%s1] sm:$0x1]
    %v34 = vld [vmem:[%s1 + $0x1] sm:$0x1]
    %v35 = vld [vmem:[%s1 + $0x2] sm:$0x1]
    %v36 = vld [vmem:[%s1 + $0x3] sm:$0x1]
    %v37 = vld [vmem:[%s1 + $0x4] sm:$0x1]
    %v38 = vld [vmem:[%s1 + $0x5] sm:$0x1]
    %vm39 = vcmask 261120
    %v40 = vsel %vm39, %v31, 0.0
    %41 = vadd.xlane.f32.xlu0 %v40
    %v42 = vpop.xlane.xlu0 %41
    %v43 = vsel %vm39, %v32, 0.0
    %44 = vadd.xlane.f32.xlu0 %v43
    %v45 = vpop.xlane.xlu0 %44
    %v46 = vrcp.pop 32.0
    %v47 = vmul.f32 %v42, %v46
    %v48 = vmul.f32 %v45, %v46
    %v49 = vsub.f32 %v31, %v47
    %v50 = vsub.f32 %v32, %v48
    %v51 = vmul.f32 %v49, %v49
    %v52 = vmul.f32 %v50, %v50
    %v53 = vsel %vm39, %v51, 0.0
    %54 = vadd.xlane.f32.xlu0 %v53
    %v55 = vpop.xlane.xlu0 %54
    %v56 = vsel %vm39, %v52, 0.0
    %57 = vadd.xlane.f32.xlu0 %v56
    %v58 = vpop.xlane.xlu0 %57
    %v59 = vmul.f32 %v55, %v46
    %v60 = vmul.f32 %v58, %v46
    %v61 = vadd.f32 %v59, 1e-05
    %v62 = vadd.f32 %v60, 1e-05
    %v63 = vrsqrt.pop %v61
    %v64 = vrsqrt.pop %v62
    %v65 = vmul.f32 %v49, %v63
    %v66 = vmul.f32 %v50, %v64
    %v67 = vlaneseq
    %v68 = vshrl.u32 %v67, 7
    %v69 = vsub.s32 0, %v68
    %v70 = vrot.slane %v33, %v69
    %v71 = vmul.f32 %v65, %v70
    %v72 = vmul.f32 %v66, %v70
    %v73 = vlaneseq
    %v74 = vshrl.u32 %v73, 7
    %v75 = vsub.s32 0, %v74
    %v76 = vrot.slane %v34, %v75
    %v77 = vadd.f32 %v71, %v76
    %v78 = vadd.f32 %v72, %v76
    %v79 = vpack.c.bf16 %v78, %v77
    %v80 = vld [vmem:[%s4] sm:$0xf]
    %v81 = vld [vmem:[%s4 + $0x4] sm:$0xf]
    %v82 = vld [vmem:[%s4 + $0x8] sm:$0xf]
    %v83 = vld [vmem:[%s4 + $0xc] sm:$0xf]
    %v88 = vunpack.c.l.b16 %v80
    %v89 = vunpack.c.l.b16 %v81
    %v90 = vunpack.c.l.b16 %v82
    %v91 = vunpack.c.l.b16 %v83
    %v92 = vpack.c.b16 %v89, %v88
    %v93 = vpack.c.b16 %v91, %v90
    %v97 = vsel %vm39, %v79, 0
    %99 = vmatprep.subr.bf16.mxu0 0
    %100 = vmatpush1.bf16.msra.mxu0 %v92
    %101 = vmatprep.subr.bf16.mxu0 0
    %102 = vmatpush1.bf16.msra.mxu0 %v93
    %103 = vmatprep.subr.bf16.mxu0 0
    %104 = vmatpush1.bf16.msra.mxu0 0
    %105 = vmatprep.subr.bf16.mxu0 0
    %106 = vmatpush1.bf16.msra.mxu0 0
    %107 = vmatprep.subr.bf16.mxu0 0
    %108 = vmatpush1.bf16.msra.mxu0 0
    %109 = vmatprep.subr.bf16.mxu0 0
    %110 = vmatpush1.bf16.msra.mxu0 0
    %111 = vmatprep.subr.bf16.mxu0 0
    %112 = vmatpush1.bf16.msra.mxu0 0
    %113 = vmatprep.subr.bf16.mxu0 0
    %114 = vmatpush1.bf16.msra.mxu0 0
    %115 = vmatprep.subr.bf16.mxu0 0
    %116 = vmatpush1.bf16.msra.mxu0 0
    %117 = vmatprep.subr.bf16.mxu0 0
    %118 = vmatpush1.bf16.msra.mxu0 0
    %119 = vmatprep.subr.bf16.mxu0 0
    %120 = vmatpush1.bf16.msra.mxu0 0
    %121 = vmatprep.subr.bf16.mxu0 0
    %122 = vmatpush1.bf16.msra.mxu0 0
    %123 = vmatprep.subr.bf16.mxu0 0
    %124 = vmatpush1.bf16.msra.mxu0 0
    %125 = vmatprep.subr.bf16.mxu0 0
    %126 = vmatpush1.bf16.msra.mxu0 0
    %127 = vmatprep.subr.bf16.mxu0 0
    %128 = vmatpush1.bf16.msra.mxu0 0
    %129 = vmatprep.subr.bf16.mxu0 0
    %130 = vmatpush1.bf16.msra.mxu0 0
    %131 = vmatprep.mubr.bf16.mxu0 0
    %132 = vmatmul.mubr.bf16.gmra.mrb[0].mxu0 %v97
    %v133 = vpop.f32.mrb[0].mxu0
    %v134 = vadd.f32 0.0, %v133
    %v135 = vpop.f32.mrb[0].mxu0
    %v136 = vpop.f32.mrb[0].mxu0
    %v137 = vadd.f32 0.0, %v136
    %v138 = vpop.f32.mrb[0].mxu0
    %139 = vdwg.mxu0
    %v140 = vld [vmem:[%s3] sm:$0xff]
    %142 = vrot.lane.b32.xlu0 %v134, 96
    %v143 = vpop.permute.xlu0 %142
    %vm144 = vcmask 64512
    %v145 = vsel %vm144, %v134, 0
    %v147 = vsel %vm144, %v143, 0
    %149 = vmatprep.subr.mxu0 0.0
    %150 = vmatpush1.xpose.msra.mxu0 %v147
    %151 = vmatprep.subr.mxu0 0.0
    %152 = vmatpush1.xpose.msra.mxu0 0.0
    %153 = vmatprep.subr.mxu0 0.0
    %154 = vmatpush1.xpose.msra.mxu0 0.0
    %155 = vmatprep.subr.mxu0 0.0
    %156 = vmatpush1.xpose.msra.mxu0 0.0
    %157 = vmatprep.subr.mxu0 0.0
    %158 = vmatpush1.xpose.msra.mxu0 0.0
    %159 = vmatprep.subr.mxu0 0.0
    %160 = vmatpush1.xpose.msra.mxu0 0.0
    %161 = vmatprep.subr.mxu0 0.0
    %162 = vmatpush1.xpose.msra.mxu0 0.0
    %163 = vmatprep.subr.mxu0 0.0
    %164 = vmatpush1.xpose.msra.mxu0 0.0
    %165 = vmatprep.subr.mxu0 0.0
    %166 = vmatpush1.xpose.msra.mxu0 0.0
    %167 = vmatprep.subr.mxu0 0.0
    %168 = vmatpush1.xpose.msra.mxu0 0.0
    %169 = vmatprep.subr.mxu0 0.0
    %170 = vmatpush1.xpose.msra.mxu0 0.0
    %171 = vmatprep.subr.mxu0 0.0
    %172 = vmatpush1.xpose.msra.mxu0 0.0
    %173 = vmatprep.subr.mxu0 0.0
    %174 = vmatpush1.xpose.msra.mxu0 0.0
    %175 = vmatprep.subr.mxu0 0.0
    %176 = vmatpush1.xpose.msra.mxu0 0.0
    %177 = vmatprep.subr.mxu0 0.0
    %178 = vmatpush1.xpose.msra.mxu0 0.0
    %179 = vmatprep.subr.mxu0 0.0
    %180 = vmatpush1.xpose.msra.mxu0 0.0
    %181 = vmatprep.subr.mxu0 0.0
    %182 = vmatpush1.xpose.msra.mxu0 0.0
    %183 = vmatprep.subr.mxu0 0.0
    %184 = vmatpush1.xpose.msra.mxu0 0.0
    %185 = vmatprep.subr.mxu0 0.0
    %186 = vmatpush1.xpose.msra.mxu0 0.0
    %187 = vmatprep.subr.mxu0 0.0
    %188 = vmatpush1.xpose.msra.mxu0 0.0
    %189 = vmatprep.subr.mxu0 0.0
    %190 = vmatpush1.xpose.msra.mxu0 0.0
    %191 = vmatprep.subr.mxu0 0.0
    %192 = vmatpush1.xpose.msra.mxu0 0.0
    %193 = vmatprep.subr.mxu0 0.0
    %194 = vmatpush1.xpose.msra.mxu0 0.0
    %195 = vmatprep.subr.mxu0 0.0
    %196 = vmatpush1.xpose.msra.mxu0 0.0
    %197 = vmatprep.subr.mxu0 0.0
    %198 = vmatpush1.xpose.msra.mxu0 0.0
    %199 = vmatprep.subr.mxu0 0.0
    %200 = vmatpush1.xpose.msra.mxu0 0.0
    %201 = vmatprep.subr.mxu0 0.0
    %202 = vmatpush1.xpose.msra.mxu0 0.0
    %203 = vmatprep.subr.mxu0 0.0
    %204 = vmatpush1.xpose.msra.mxu0 0.0
    %205 = vmatprep.subr.mxu0 0.0
    %206 = vmatpush1.xpose.msra.mxu0 0.0
    %207 = vmatprep.subr.mxu0 0.0
    %208 = vmatpush1.xpose.msra.mxu0 0.0
    %209 = vmatprep.subr.mxu0 0.0
    %210 = vmatpush1.xpose.msra.mxu0 0.0
    %211 = vmatprep.subr.mxu0 0.0
    %212 = vmatpush1.xpose.msra.mxu0 0.0
    %213 = vmatprep.mubr.f32.mxu0 0.0
    %214 = vmatmul.mubr.f32.gmra.mrb[0].mxu0 %v145
    %v215 = vpop.f32.mrb[0].mxu0
    %v216 = vadd.f32 0.0, %v215
    %v217 = vpop.f32.mrb[0].mxu0
    %218 = vdwg.mxu0
    %220 = vrot.lane.b32.xlu0 %v137, 96
    %v221 = vpop.permute.xlu0 %220
    %v222 = vsel %vm144, %v137, 0
    %v224 = vsel %vm144, %v221, 0
    %226 = vmatprep.subr.mxu0 0.0
    %227 = vmatpush1.xpose.msra.mxu0 %v224
    %228 = vmatprep.subr.mxu0 0.0
    %229 = vmatpush1.xpose.msra.mxu0 0.0
    %230 = vmatprep.subr.mxu0 0.0
    %231 = vmatpush1.xpose.msra.mxu0 0.0
    %232 = vmatprep.subr.mxu0 0.0
    %233 = vmatpush1.xpose.msra.mxu0 0.0
    %234 = vmatprep.subr.mxu0 0.0
    %235 = vmatpush1.xpose.msra.mxu0 0.0
    %236 = vmatprep.subr.mxu0 0.0
    %237 = vmatpush1.xpose.msra.mxu0 0.0
    %238 = vmatprep.subr.mxu0 0.0
    %239 = vmatpush1.xpose.msra.mxu0 0.0
    %240 = vmatprep.subr.mxu0 0.0
    %241 = vmatpush1.xpose.msra.mxu0 0.0
    %242 = vmatprep.subr.mxu0 0.0
    %243 = vmatpush1.xpose.msra.mxu0 0.0
    %244 = vmatprep.subr.mxu0 0.0
    %245 = vmatpush1.xpose.msra.mxu0 0.0
    %246 = vmatprep.subr.mxu0 0.0
    %247 = vmatpush1.xpose.msra.mxu0 0.0
    %248 = vmatprep.subr.mxu0 0.0
    %249 = vmatpush1.xpose.msra.mxu0 0.0
    %250 = vmatprep.subr.mxu0 0.0
    %251 = vmatpush1.xpose.msra.mxu0 0.0
    %252 = vmatprep.subr.mxu0 0.0
    %253 = vmatpush1.xpose.msra.mxu0 0.0
    %254 = vmatprep.subr.mxu0 0.0
    %255 = vmatpush1.xpose.msra.mxu0 0.0
    %256 = vmatprep.subr.mxu0 0.0
    %257 = vmatpush1.xpose.msra.mxu0 0.0
    %258 = vmatprep.subr.mxu0 0.0
    %259 = vmatpush1.xpose.msra.mxu0 0.0
    %260 = vmatprep.subr.mxu0 0.0
    %261 = vmatpush1.xpose.msra.mxu0 0.0
    %262 = vmatprep.subr.mxu0 0.0
    %263 = vmatpush1.xpose.msra.mxu0 0.0
    %264 = vmatprep.subr.mxu0 0.0
    %265 = vmatpush1.xpose.msra.mxu0 0.0
    %266 = vmatprep.subr.mxu0 0.0
    %267 = vmatpush1.xpose.msra.mxu0 0.0
    %268 = vmatprep.subr.mxu0 0.0
    %269 = vmatpush1.xpose.msra.mxu0 0.0
    %270 = vmatprep.subr.mxu0 0.0
    %271 = vmatpush1.xpose.msra.mxu0 0.0
    %272 = vmatprep.subr.mxu0 0.0
    %273 = vmatpush1.xpose.msra.mxu0 0.0
    %274 = vmatprep.subr.mxu0 0.0
    %275 = vmatpush1.xpose.msra.mxu0 0.0
    %276 = vmatprep.subr.mxu0 0.0
    %277 = vmatpush1.xpose.msra.mxu0 0.0
    %278 = vmatprep.subr.mxu0 0.0
    %279 = vmatpush1.xpose.msra.mxu0 0.0
    %280 = vmatprep.subr.mxu0 0.0
    %281 = vmatpush1.xpose.msra.mxu0 0.0
    %282 = vmatprep.subr.mxu0 0.0
    %283 = vmatpush1.xpose.msra.mxu0 0.0
    %284 = vmatprep.subr.mxu0 0.0
    %285 = vmatpush1.xpose.msra.mxu0 0.0
    %286 = vmatprep.subr.mxu0 0.0
    %287 = vmatpush1.xpose.msra.mxu0 0.0
    %288 = vmatprep.subr.mxu0 0.0
    %289 = vmatpush1.xpose.msra.mxu0 0.0
    %290 = vmatprep.mubr.f32.mxu0 0.0
    %291 = vmatmul.mubr.f32.gmra.mrb[0].mxu0 %v222
    %v292 = vpop.f32.mrb[0].mxu0
    %v293 = vadd.f32 0.0, %v292
    %v294 = vpop.f32.mrb[0].mxu0
    %295 = vdwg.mxu0
    %v296 = vmul.f32 %v216, 0.17677669
    %v297 = vmul.f32 %v293, 0.17677669
    %v298 = vadd.f32 %v296, %v140
    %v299 = vadd.f32 %v297, %v140
    %v300 = vsel %vm144, %v298, -inf
    %301 = vmax.xlane.f32.xlu0 %v300
    %v302 = vpop.xlane.xlu0 %301
    %v303 = vsel %vm144, %v299, -inf
    %304 = vmax.xlane.f32.xlu0 %v303
    %v305 = vpop.xlane.xlu0 %304
    %v306 = vsub.f32 %v298, %v302
    %v307 = vsub.f32 %v299, %v305
    %v308 = vmul.f32 %v306, 1.442695
    %v309 = vpow.pop %v308
    %v310 = vmul.f32 %v307, 1.442695
    %v311 = vpow.pop %v310
    %v312 = vsel %vm144, %v309, 0.0
    %313 = vadd.xlane.f32.xlu0 %v312
    %v314 = vpop.xlane.xlu0 %313
    %v315 = vsel %vm144, %v311, 0.0
    %316 = vadd.xlane.f32.xlu0 %v315
    %v317 = vpop.xlane.xlu0 %316
    %v318 = vrcp.pop %v314
    %v319 = vrcp.pop %v317
    %v320 = vmul.f32 %v309, %v318
    %v321 = vmul.f32 %v311, %v319
    %322 = vrot.lane.b32.xlu0 %v134, 64
    %v323 = vpop.permute.xlu0 %322
    %v326 = vsel %vm144, %v320, 0
    %328 = vmatprep.subr.mxu0 0.0
    %329 = vmatpush1.msra.mxu0 %v323
    %330 = vmatprep.subr.mxu0 0.0
    %331 = vmatpush1.msra.mxu0 0.0
    %332 = vmatprep.subr.mxu0 0.0
    %333 = vmatpush1.msra.mxu0 0.0
    %334 = vmatprep.subr.mxu0 0.0
    %335 = vmatpush1.msra.mxu0 0.0
    %336 = vmatprep.subr.mxu0 0.0
    %337 = vmatpush1.msra.mxu0 0.0
    %338 = vmatprep.subr.mxu0 0.0
    %339 = vmatpush1.msra.mxu0 0.0
    %340 = vmatprep.subr.mxu0 0.0
    %341 = vmatpush1.msra.mxu0 0.0
    %342 = vmatprep.subr.mxu0 0.0
    %343 = vmatpush1.msra.mxu0 0.0
    %344 = vmatprep.subr.mxu0 0.0
    %345 = vmatpush1.msra.mxu0 0.0
    %346 = vmatprep.subr.mxu0 0.0
    %347 = vmatpush1.msra.mxu0 0.0
    %348 = vmatprep.subr.mxu0 0.0
    %349 = vmatpush1.msra.mxu0 0.0
    %350 = vmatprep.subr.mxu0 0.0
    %351 = vmatpush1.msra.mxu0 0.0
    %352 = vmatprep.subr.mxu0 0.0
    %353 = vmatpush1.msra.mxu0 0.0
    %354 = vmatprep.subr.mxu0 0.0
    %355 = vmatpush1.msra.mxu0 0.0
    %356 = vmatprep.subr.mxu0 0.0
    %357 = vmatpush1.msra.mxu0 0.0
    %358 = vmatprep.subr.mxu0 0.0
    %359 = vmatpush1.msra.mxu0 0.0
    %360 = vmatprep.subr.mxu0 0.0
    %361 = vmatpush1.msra.mxu0 0.0
    %362 = vmatprep.subr.mxu0 0.0
    %363 = vmatpush1.msra.mxu0 0.0
    %364 = vmatprep.subr.mxu0 0.0
    %365 = vmatpush1.msra.mxu0 0.0
    %366 = vmatprep.subr.mxu0 0.0
    %367 = vmatpush1.msra.mxu0 0.0
    %368 = vmatprep.subr.mxu0 0.0
    %369 = vmatpush1.msra.mxu0 0.0
    %370 = vmatprep.subr.mxu0 0.0
    %371 = vmatpush1.msra.mxu0 0.0
    %372 = vmatprep.subr.mxu0 0.0
    %373 = vmatpush1.msra.mxu0 0.0
    %374 = vmatprep.subr.mxu0 0.0
    %375 = vmatpush1.msra.mxu0 0.0
    %376 = vmatprep.subr.mxu0 0.0
    %377 = vmatpush1.msra.mxu0 0.0
    %378 = vmatprep.subr.mxu0 0.0
    %379 = vmatpush1.msra.mxu0 0.0
    %380 = vmatprep.subr.mxu0 0.0
    %381 = vmatpush1.msra.mxu0 0.0
    %382 = vmatprep.subr.mxu0 0.0
    %383 = vmatpush1.msra.mxu0 0.0
    %384 = vmatprep.subr.mxu0 0.0
    %385 = vmatpush1.msra.mxu0 0.0
    %386 = vmatprep.subr.mxu0 0.0
    %387 = vmatpush1.msra.mxu0 0.0
    %388 = vmatprep.subr.mxu0 0.0
    %389 = vmatpush1.msra.mxu0 0.0
    %390 = vmatprep.subr.mxu0 0.0
    %391 = vmatpush1.msra.mxu0 0.0
    %392 = vmatprep.mubr.f32.mxu0 0.0
    %393 = vmatmul.mubr.f32.gmra.mrb[0].mxu0 %v326
    %v394 = vpop.f32.mrb[0].mxu0
    %v395 = vadd.f32 0.0, %v394
    %v396 = vpop.f32.mrb[0].mxu0
    %397 = vdwg.mxu0
    %398 = vrot.lane.b32.xlu0 %v137, 64
    %v399 = vpop.permute.xlu0 %398
    %v402 = vsel %vm144, %v321, 0
    %404 = vmatprep.subr.mxu0 0.0
    %405 = vmatpush1.msra.mxu0 %v399
    %406 = vmatprep.subr.mxu0 0.0
    %407 = vmatpush1.msra.mxu0 0.0
    %408 = vmatprep.subr.mxu0 0.0
    %409 = vmatpush1.msra.mxu0 0.0
    %410 = vmatprep.subr.mxu0 0.0
    %411 = vmatpush1.msra.mxu0 0.0
    %412 = vmatprep.subr.mxu0 0.0
    %413 = vmatpush1.msra.mxu0 0.0
    %414 = vmatprep.subr.mxu0 0.0
    %415 = vmatpush1.msra.mxu0 0.0
    %416 = vmatprep.subr.mxu0 0.0
    %417 = vmatpush1.msra.mxu0 0.0
    %418 = vmatprep.subr.mxu0 0.0
    %419 = vmatpush1.msra.mxu0 0.0
    %420 = vmatprep.subr.mxu0 0.0
    %421 = vmatpush1.msra.mxu0 0.0
    %422 = vmatprep.subr.mxu0 0.0
    %423 = vmatpush1.msra.mxu0 0.0
    %424 = vmatprep.subr.mxu0 0.0
    %425 = vmatpush1.msra.mxu0 0.0
    %426 = vmatprep.subr.mxu0 0.0
    %427 = vmatpush1.msra.mxu0 0.0
    %428 = vmatprep.subr.mxu0 0.0
    %429 = vmatpush1.msra.mxu0 0.0
    %430 = vmatprep.subr.mxu0 0.0
    %431 = vmatpush1.msra.mxu0 0.0
    %432 = vmatprep.subr.mxu0 0.0
    %433 = vmatpush1.msra.mxu0 0.0
    %434 = vmatprep.subr.mxu0 0.0
    %435 = vmatpush1.msra.mxu0 0.0
    %436 = vmatprep.subr.mxu0 0.0
    %437 = vmatpush1.msra.mxu0 0.0
    %438 = vmatprep.subr.mxu0 0.0
    %439 = vmatpush1.msra.mxu0 0.0
    %440 = vmatprep.subr.mxu0 0.0
    %441 = vmatpush1.msra.mxu0 0.0
    %442 = vmatprep.subr.mxu0 0.0
    %443 = vmatpush1.msra.mxu0 0.0
    %444 = vmatprep.subr.mxu0 0.0
    %445 = vmatpush1.msra.mxu0 0.0
    %446 = vmatprep.subr.mxu0 0.0
    %447 = vmatpush1.msra.mxu0 0.0
    %448 = vmatprep.subr.mxu0 0.0
    %449 = vmatpush1.msra.mxu0 0.0
    %450 = vmatprep.subr.mxu0 0.0
    %451 = vmatpush1.msra.mxu0 0.0
    %452 = vmatprep.subr.mxu0 0.0
    %453 = vmatpush1.msra.mxu0 0.0
    %454 = vmatprep.subr.mxu0 0.0
    %455 = vmatpush1.msra.mxu0 0.0
    %456 = vmatprep.subr.mxu0 0.0
    %457 = vmatpush1.msra.mxu0 0.0
    %458 = vmatprep.subr.mxu0 0.0
    %459 = vmatpush1.msra.mxu0 0.0
    %460 = vmatprep.subr.mxu0 0.0
    %461 = vmatpush1.msra.mxu0 0.0
    %462 = vmatprep.subr.mxu0 0.0
    %463 = vmatpush1.msra.mxu0 0.0
    %464 = vmatprep.subr.mxu0 0.0
    %465 = vmatpush1.msra.mxu0 0.0
    %466 = vmatprep.subr.mxu0 0.0
    %467 = vmatpush1.msra.mxu0 0.0
    %468 = vmatprep.mubr.f32.mxu0 0.0
    %469 = vmatmul.mubr.f32.gmra.mrb[0].mxu0 %v402
    %v470 = vpop.f32.mrb[0].mxu0
    %v471 = vadd.f32 0.0, %v470
    %v472 = vpop.f32.mrb[0].mxu0
    %473 = vdwg.mxu0
    %474 = vrot.lane.b32.xlu0 %v134, 120
    %v475 = vpop.permute.xlu0 %474
    %476 = vrot.lane.b32.xlu0 %v134, 88
    %v477 = vpop.permute.xlu0 %476
    %v478 = vsel %vm144, %v475, 0
    %v480 = vsel %vm144, %v477, 0
    %482 = vmatprep.subr.mxu0 0.0
    %483 = vmatpush1.xpose.msra.mxu0 %v480
    %484 = vmatprep.subr.mxu0 0.0
    %485 = vmatpush1.xpose.msra.mxu0 0.0
    %486 = vmatprep.subr.mxu0 0.0
    %487 = vmatpush1.xpose.msra.mxu0 0.0
    %488 = vmatprep.subr.mxu0 0.0
    %489 = vmatpush1.xpose.msra.mxu0 0.0
    %490 = vmatprep.subr.mxu0 0.0
    %491 = vmatpush1.xpose.msra.mxu0 0.0
    %492 = vmatprep.subr.mxu0 0.0
    %493 = vmatpush1.xpose.msra.mxu0 0.0
    %494 = vmatprep.subr.mxu0 0.0
    %495 = vmatpush1.xpose.msra.mxu0 0.0
    %496 = vmatprep.subr.mxu0 0.0
    %497 = vmatpush1.xpose.msra.mxu0 0.0
    %498 = vmatprep.subr.mxu0 0.0
    %499 = vmatpush1.xpose.msra.mxu0 0.0
    %500 = vmatprep.subr.mxu0 0.0
    %501 = vmatpush1.xpose.msra.mxu0 0.0
    %502 = vmatprep.subr.mxu0 0.0
    %503 = vmatpush1.xpose.msra.mxu0 0.0
    %504 = vmatprep.subr.mxu0 0.0
    %505 = vmatpush1.xpose.msra.mxu0 0.0
    %506 = vmatprep.subr.mxu0 0.0
    %507 = vmatpush1.xpose.msra.mxu0 0.0
    %508 = vmatprep.subr.mxu0 0.0
    %509 = vmatpush1.xpose.msra.mxu0 0.0
    %510 = vmatprep.subr.mxu0 0.0
    %511 = vmatpush1.xpose.msra.mxu0 0.0
    %512 = vmatprep.subr.mxu0 0.0
    %513 = vmatpush1.xpose.msra.mxu0 0.0
    %514 = vmatprep.subr.mxu0 0.0
    %515 = vmatpush1.xpose.msra.mxu0 0.0
    %516 = vmatprep.subr.mxu0 0.0
    %517 = vmatpush1.xpose.msra.mxu0 0.0
    %518 = vmatprep.subr.mxu0 0.0
    %519 = vmatpush1.xpose.msra.mxu0 0.0
    %520 = vmatprep.subr.mxu0 0.0
    %521 = vmatpush1.xpose.msra.mxu0 0.0
    %522 = vmatprep.subr.mxu0 0.0
    %523 = vmatpush1.xpose.msra.mxu0 0.0
    %524 = vmatprep.subr.mxu0 0.0
    %525 = vmatpush1.xpose.msra.mxu0 0.0
    %526 = vmatprep.subr.mxu0 0.0
    %527 = vmatpush1.xpose.msra.mxu0 0.0
    %528 = vmatprep.subr.mxu0 0.0
    %529 = vmatpush1.xpose.msra.mxu0 0.0
    %530 = vmatprep.subr.mxu0 0.0
    %531 = vmatpush1.xpose.msra.mxu0 0.0
    %532 = vmatprep.subr.mxu0 0.0
    %533 = vmatpush1.xpose.msra.mxu0 0.0
    %534 = vmatprep.subr.mxu0 0.0
    %535 = vmatpush1.xpose.msra.mxu0 0.0
    %536 = vmatprep.subr.mxu0 0.0
    %537 = vmatpush1.xpose.msra.mxu0 0.0
    %538 = vmatprep.subr.mxu0 0.0
    %539 = vmatpush1.xpose.msra.mxu0 0.0
    %540 = vmatprep.subr.mxu0 0.0
    %541 = vmatpush1.xpose.msra.mxu0 0.0
    %542 = vmatprep.subr.mxu0 0.0
    %543 = vmatpush1.xpose.msra.mxu0 0.0
    %544 = vmatprep.subr.mxu0 0.0
    %545 = vmatpush1.xpose.msra.mxu0 0.0
    %546 = vmatprep.mubr.f32.mxu0 0.0
    %547 = vmatmul.mubr.f32.gmra.mrb[0].mxu0 %v478
    %v548 = vpop.f32.mrb[0].mxu0
    %v549 = vadd.f32 0.0, %v548
    %v550 = vpop.f32.mrb[0].mxu0
    %551 = vdwg.mxu0
    %552 = vrot.lane.b32.xlu0 %v137, 120
    %v553 = vpop.permute.xlu0 %552
    %554 = vrot.lane.b32.xlu0 %v137, 88
    %v555 = vpop.permute.xlu0 %554
    %v556 = vsel %vm144, %v553, 0
    %v558 = vsel %vm144, %v555, 0
    %560 = vmatprep.subr.mxu0 0.0
    %561 = vmatpush1.xpose.msra.mxu0 %v558
    %562 = vmatprep.subr.mxu0 0.0
    %563 = vmatpush1.xpose.msra.mxu0 0.0
    %564 = vmatprep.subr.mxu0 0.0
    %565 = vmatpush1.xpose.msra.mxu0 0.0
    %566 = vmatprep.subr.mxu0 0.0
    %567 = vmatpush1.xpose.msra.mxu0 0.0
    %568 = vmatprep.subr.mxu0 0.0
    %569 = vmatpush1.xpose.msra.mxu0 0.0
    %570 = vmatprep.subr.mxu0 0.0
    %571 = vmatpush1.xpose.msra.mxu0 0.0
    %572 = vmatprep.subr.mxu0 0.0
    %573 = vmatpush1.xpose.msra.mxu0 0.0
    %574 = vmatprep.subr.mxu0 0.0
    %575 = vmatpush1.xpose.msra.mxu0 0.0
    %576 = vmatprep.subr.mxu0 0.0
    %577 = vmatpush1.xpose.msra.mxu0 0.0
    %578 = vmatprep.subr.mxu0 0.0
    %579 = vmatpush1.xpose.msra.mxu0 0.0
    %580 = vmatprep.subr.mxu0 0.0
    %581 = vmatpush1.xpose.msra.mxu0 0.0
    %582 = vmatprep.subr.mxu0 0.0
    %583 = vmatpush1.xpose.msra.mxu0 0.0
    %584 = vmatprep.subr.mxu0 0.0
    %585 = vmatpush1.xpose.msra.mxu0 0.0
    %586 = vmatprep.subr.mxu0 0.0
    %587 = vmatpush1.xpose.msra.mxu0 0.0
    %588 = vmatprep.subr.mxu0 0.0
    %589 = vmatpush1.xpose.msra.mxu0 0.0
    %590 = vmatprep.subr.mxu0 0.0
    %591 = vmatpush1.xpose.msra.mxu0 0.0
    %592 = vmatprep.subr.mxu0 0.0
    %593 = vmatpush1.xpose.msra.mxu0 0.0
    %594 = vmatprep.subr.mxu0 0.0
    %595 = vmatpush1.xpose.msra.mxu0 0.0
    %596 = vmatprep.subr.mxu0 0.0
    %597 = vmatpush1.xpose.msra.mxu0 0.0
    %598 = vmatprep.subr.mxu0 0.0
    %599 = vmatpush1.xpose.msra.mxu0 0.0
    %600 = vmatprep.subr.mxu0 0.0
    %601 = vmatpush1.xpose.msra.mxu0 0.0
    %602 = vmatprep.subr.mxu0 0.0
    %603 = vmatpush1.xpose.msra.mxu0 0.0
    %604 = vmatprep.subr.mxu0 0.0
    %605 = vmatpush1.xpose.msra.mxu0 0.0
    %606 = vmatprep.subr.mxu0 0.0
    %607 = vmatpush1.xpose.msra.mxu0 0.0
    %608 = vmatprep.subr.mxu0 0.0
    %609 = vmatpush1.xpose.msra.mxu0 0.0
    %610 = vmatprep.subr.mxu0 0.0
    %611 = vmatpush1.xpose.msra.mxu0 0.0
    %612 = vmatprep.subr.mxu0 0.0
    %613 = vmatpush1.xpose.msra.mxu0 0.0
    %614 = vmatprep.subr.mxu0 0.0
    %615 = vmatpush1.xpose.msra.mxu0 0.0
    %616 = vmatprep.subr.mxu0 0.0
    %617 = vmatpush1.xpose.msra.mxu0 0.0
    %618 = vmatprep.subr.mxu0 0.0
    %619 = vmatpush1.xpose.msra.mxu0 0.0
    %620 = vmatprep.subr.mxu0 0.0
    %621 = vmatpush1.xpose.msra.mxu0 0.0
    %622 = vmatprep.subr.mxu0 0.0
    %623 = vmatpush1.xpose.msra.mxu0 0.0
    %624 = vmatprep.mubr.f32.mxu0 0.0
    %625 = vmatmul.mubr.f32.gmra.mrb[0].mxu0 %v556
    %v626 = vpop.f32.mrb[0].mxu0
    %v627 = vadd.f32 0.0, %v626
    %v628 = vpop.f32.mrb[0].mxu0
    %629 = vdwg.mxu0
    %v630 = vmul.f32 %v549, 0.17677669
    %v631 = vmul.f32 %v627, 0.17677669
    %v632 = vadd.f32 %v630, %v140
    %v633 = vadd.f32 %v631, %v140
    %v634 = vsel %vm144, %v632, -inf
    %635 = vmax.xlane.f32.xlu0 %v634
    %v636 = vpop.xlane.xlu0 %635
    %v637 = vsel %vm144, %v633, -inf
    %638 = vmax.xlane.f32.xlu0 %v637
    %v639 = vpop.xlane.xlu0 %638
    %v640 = vsub.f32 %v632, %v636
    %v641 = vsub.f32 %v633, %v639
    %v642 = vmul.f32 %v640, 1.442695
    %v643 = vpow.pop %v642
    %v644 = vmul.f32 %v641, 1.442695
    %v645 = vpow.pop %v644
    %v646 = vsel %vm144, %v643, 0.0
    %647 = vadd.xlane.f32.xlu0 %v646
    %v648 = vpop.xlane.xlu0 %647
    %v649 = vsel %vm144, %v645, 0.0
    %650 = vadd.xlane.f32.xlu0 %v649
    %v651 = vpop.xlane.xlu0 %650
    %v652 = vrcp.pop %v648
    %v653 = vrcp.pop %v651
    %v654 = vmul.f32 %v643, %v652
    %v655 = vmul.f32 %v645, %v653
    %656 = vrot.lane.b32.xlu0 %v134, 56
    %v657 = vpop.permute.xlu0 %656
    %v660 = vsel %vm144, %v654, 0
    %662 = vmatprep.subr.mxu0 0.0
    %663 = vmatpush1.msra.mxu0 %v657
    %664 = vmatprep.subr.mxu0 0.0
    %665 = vmatpush1.msra.mxu0 0.0
    %666 = vmatprep.subr.mxu0 0.0
    %667 = vmatpush1.msra.mxu0 0.0
    %668 = vmatprep.subr.mxu0 0.0
    %669 = vmatpush1.msra.mxu0 0.0
    %670 = vmatprep.subr.mxu0 0.0
    %671 = vmatpush1.msra.mxu0 0.0
    %672 = vmatprep.subr.mxu0 0.0
    %673 = vmatpush1.msra.mxu0 0.0
    %674 = vmatprep.subr.mxu0 0.0
    %675 = vmatpush1.msra.mxu0 0.0
    %676 = vmatprep.subr.mxu0 0.0
    %677 = vmatpush1.msra.mxu0 0.0
    %678 = vmatprep.subr.mxu0 0.0
    %679 = vmatpush1.msra.mxu0 0.0
    %680 = vmatprep.subr.mxu0 0.0
    %681 = vmatpush1.msra.mxu0 0.0
    %682 = vmatprep.subr.mxu0 0.0
    %683 = vmatpush1.msra.mxu0 0.0
    %684 = vmatprep.subr.mxu0 0.0
    %685 = vmatpush1.msra.mxu0 0.0
    %686 = vmatprep.subr.mxu0 0.0
    %687 = vmatpush1.msra.mxu0 0.0
    %688 = vmatprep.subr.mxu0 0.0
    %689 = vmatpush1.msra.mxu0 0.0
    %690 = vmatprep.subr.mxu0 0.0
    %691 = vmatpush1.msra.mxu0 0.0
    %692 = vmatprep.subr.mxu0 0.0
    %693 = vmatpush1.msra.mxu0 0.0
    %694 = vmatprep.subr.mxu0 0.0
    %695 = vmatpush1.msra.mxu0 0.0
    %696 = vmatprep.subr.mxu0 0.0
    %697 = vmatpush1.msra.mxu0 0.0
    %698 = vmatprep.subr.mxu0 0.0
    %699 = vmatpush1.msra.mxu0 0.0
    %700 = vmatprep.subr.mxu0 0.0
    %701 = vmatpush1.msra.mxu0 0.0
    %702 = vmatprep.subr.mxu0 0.0
    %703 = vmatpush1.msra.mxu0 0.0
    %704 = vmatprep.subr.mxu0 0.0
    %705 = vmatpush1.msra.mxu0 0.0
    %706 = vmatprep.subr.mxu0 0.0
    %707 = vmatpush1.msra.mxu0 0.0
    %708 = vmatprep.subr.mxu0 0.0
    %709 = vmatpush1.msra.mxu0 0.0
    %710 = vmatprep.subr.mxu0 0.0
    %711 = vmatpush1.msra.mxu0 0.0
    %712 = vmatprep.subr.mxu0 0.0
    %713 = vmatpush1.msra.mxu0 0.0
    %714 = vmatprep.subr.mxu0 0.0
    %715 = vmatpush1.msra.mxu0 0.0
    %716 = vmatprep.subr.mxu0 0.0
    %717 = vmatpush1.msra.mxu0 0.0
    %718 = vmatprep.subr.mxu0 0.0
    %719 = vmatpush1.msra.mxu0 0.0
    %720 = vmatprep.subr.mxu0 0.0
    %721 = vmatpush1.msra.mxu0 0.0
    %722 = vmatprep.subr.mxu0 0.0
    %723 = vmatpush1.msra.mxu0 0.0
    %724 = vmatprep.subr.mxu0 0.0
    %725 = vmatpush1.msra.mxu0 0.0
    %726 = vmatprep.mubr.f32.mxu0 0.0
    %727 = vmatmul.mubr.f32.gmra.mrb[0].mxu0 %v660
    %v728 = vpop.f32.mrb[0].mxu0
    %v729 = vadd.f32 0.0, %v728
    %v730 = vpop.f32.mrb[0].mxu0
    %731 = vdwg.mxu0
    %732 = vrot.lane.b32.xlu0 %v137, 56
    %v733 = vpop.permute.xlu0 %732
    %v736 = vsel %vm144, %v655, 0
    %738 = vmatprep.subr.mxu0 0.0
    %739 = vmatpush1.msra.mxu0 %v733
    %740 = vmatprep.subr.mxu0 0.0
    %741 = vmatpush1.msra.mxu0 0.0
    %742 = vmatprep.subr.mxu0 0.0
    %743 = vmatpush1.msra.mxu0 0.0
    %744 = vmatprep.subr.mxu0 0.0
    %745 = vmatpush1.msra.mxu0 0.0
    %746 = vmatprep.subr.mxu0 0.0
    %747 = vmatpush1.msra.mxu0 0.0
    %748 = vmatprep.subr.mxu0 0.0
    %749 = vmatpush1.msra.mxu0 0.0
    %750 = vmatprep.subr.mxu0 0.0
    %751 = vmatpush1.msra.mxu0 0.0
    %752 = vmatprep.subr.mxu0 0.0
    %753 = vmatpush1.msra.mxu0 0.0
    %754 = vmatprep.subr.mxu0 0.0
    %755 = vmatpush1.msra.mxu0 0.0
    %756 = vmatprep.subr.mxu0 0.0
    %757 = vmatpush1.msra.mxu0 0.0
    %758 = vmatprep.subr.mxu0 0.0
    %759 = vmatpush1.msra.mxu0 0.0
    %760 = vmatprep.subr.mxu0 0.0
    %761 = vmatpush1.msra.mxu0 0.0
    %762 = vmatprep.subr.mxu0 0.0
    %763 = vmatpush1.msra.mxu0 0.0
    %764 = vmatprep.subr.mxu0 0.0
    %765 = vmatpush1.msra.mxu0 0.0
    %766 = vmatprep.subr.mxu0 0.0
    %767 = vmatpush1.msra.mxu0 0.0
    %768 = vmatprep.subr.mxu0 0.0
    %769 = vmatpush1.msra.mxu0 0.0
    %770 = vmatprep.subr.mxu0 0.0
    %771 = vmatpush1.msra.mxu0 0.0
    %772 = vmatprep.subr.mxu0 0.0
    %773 = vmatpush1.msra.mxu0 0.0
    %774 = vmatprep.subr.mxu0 0.0
    %775 = vmatpush1.msra.mxu0 0.0
    %776 = vmatprep.subr.mxu0 0.0
    %777 = vmatpush1.msra.mxu0 0.0
    %778 = vmatprep.subr.mxu0 0.0
    %779 = vmatpush1.msra.mxu0 0.0
    %780 = vmatprep.subr.mxu0 0.0
    %781 = vmatpush1.msra.mxu0 0.0
    %782 = vmatprep.subr.mxu0 0.0
    %783 = vmatpush1.msra.mxu0 0.0
    %784 = vmatprep.subr.mxu0 0.0
    %785 = vmatpush1.msra.mxu0 0.0
    %786 = vmatprep.subr.mxu0 0.0
    %787 = vmatpush1.msra.mxu0 0.0
    %788 = vmatprep.subr.mxu0 0.0
    %789 = vmatpush1.msra.mxu0 0.0
    %790 = vmatprep.subr.mxu0 0.0
    %791 = vmatpush1.msra.mxu0 0.0
    %792 = vmatprep.subr.mxu0 0.0
    %793 = vmatpush1.msra.mxu0 0.0
    %794 = vmatprep.subr.mxu0 0.0
    %795 = vmatpush1.msra.mxu0 0.0
    %796 = vmatprep.subr.mxu0 0.0
    %797 = vmatpush1.msra.mxu0 0.0
    %798 = vmatprep.subr.mxu0 0.0
    %799 = vmatpush1.msra.mxu0 0.0
    %800 = vmatprep.subr.mxu0 0.0
    %801 = vmatpush1.msra.mxu0 0.0
    %802 = vmatprep.mubr.f32.mxu0 0.0
    %803 = vmatmul.mubr.f32.gmra.mrb[0].mxu0 %v736
    %v804 = vpop.f32.mrb[0].mxu0
    %v805 = vadd.f32 0.0, %v804
    %v806 = vpop.f32.mrb[0].mxu0
    %807 = vdwg.mxu0
    %808 = vrot.lane.b32.xlu0 %v134, 112
    %v809 = vpop.permute.xlu0 %808
    %810 = vrot.lane.b32.xlu0 %v134, 80
    %v811 = vpop.permute.xlu0 %810
    %v812 = vsel %vm144, %v809, 0
    %v814 = vsel %vm144, %v811, 0
    %816 = vmatprep.subr.mxu0 0.0
    %817 = vmatpush1.xpose.msra.mxu0 %v814
    %818 = vmatprep.subr.mxu0 0.0
    %819 = vmatpush1.xpose.msra.mxu0 0.0
    %820 = vmatprep.subr.mxu0 0.0
    %821 = vmatpush1.xpose.msra.mxu0 0.0
    %822 = vmatprep.subr.mxu0 0.0
    %823 = vmatpush1.xpose.msra.mxu0 0.0
    %824 = vmatprep.subr.mxu0 0.0
    %825 = vmatpush1.xpose.msra.mxu0 0.0
    %826 = vmatprep.subr.mxu0 0.0
    %827 = vmatpush1.xpose.msra.mxu0 0.0
    %828 = vmatprep.subr.mxu0 0.0
    %829 = vmatpush1.xpose.msra.mxu0 0.0
    %830 = vmatprep.subr.mxu0 0.0
    %831 = vmatpush1.xpose.msra.mxu0 0.0
    %832 = vmatprep.subr.mxu0 0.0
    %833 = vmatpush1.xpose.msra.mxu0 0.0
    %834 = vmatprep.subr.mxu0 0.0
    %835 = vmatpush1.xpose.msra.mxu0 0.0
    %836 = vmatprep.subr.mxu0 0.0
    %837 = vmatpush1.xpose.msra.mxu0 0.0
    %838 = vmatprep.subr.mxu0 0.0
    %839 = vmatpush1.xpose.msra.mxu0 0.0
    %840 = vmatprep.subr.mxu0 0.0
    %841 = vmatpush1.xpose.msra.mxu0 0.0
    %842 = vmatprep.subr.mxu0 0.0
    %843 = vmatpush1.xpose.msra.mxu0 0.0
    %844 = vmatprep.subr.mxu0 0.0
    %845 = vmatpush1.xpose.msra.mxu0 0.0
    %846 = vmatprep.subr.mxu0 0.0
    %847 = vmatpush1.xpose.msra.mxu0 0.0
    %848 = vmatprep.subr.mxu0 0.0
    %849 = vmatpush1.xpose.msra.mxu0 0.0
    %850 = vmatprep.subr.mxu0 0.0
    %851 = vmatpush1.xpose.msra.mxu0 0.0
    %852 = vmatprep.subr.mxu0 0.0
    %853 = vmatpush1.xpose.msra.mxu0 0.0
    %854 = vmatprep.subr.mxu0 0.0
    %855 = vmatpush1.xpose.msra.mxu0 0.0
    %856 = vmatprep.subr.mxu0 0.0
    %857 = vmatpush1.xpose.msra.mxu0 0.0
    %858 = vmatprep.subr.mxu0 0.0
    %859 = vmatpush1.xpose.msra.mxu0 0.0
    %860 = vmatprep.subr.mxu0 0.0
    %861 = vmatpush1.xpose.msra.mxu0 0.0
    %862 = vmatprep.subr.mxu0 0.0
    %863 = vmatpush1.xpose.msra.mxu0 0.0
    %864 = vmatprep.subr.mxu0 0.0
    %865 = vmatpush1.xpose.msra.mxu0 0.0
    %866 = vmatprep.subr.mxu0 0.0
    %867 = vmatpush1.xpose.msra.mxu0 0.0
    %868 = vmatprep.subr.mxu0 0.0
    %869 = vmatpush1.xpose.msra.mxu0 0.0
    %870 = vmatprep.subr.mxu0 0.0
    %871 = vmatpush1.xpose.msra.mxu0 0.0
    %872 = vmatprep.subr.mxu0 0.0
    %873 = vmatpush1.xpose.msra.mxu0 0.0
    %874 = vmatprep.subr.mxu0 0.0
    %875 = vmatpush1.xpose.msra.mxu0 0.0
    %876 = vmatprep.subr.mxu0 0.0
    %877 = vmatpush1.xpose.msra.mxu0 0.0
    %878 = vmatprep.subr.mxu0 0.0
    %879 = vmatpush1.xpose.msra.mxu0 0.0
    %880 = vmatprep.mubr.f32.mxu0 0.0
    %881 = vmatmul.mubr.f32.gmra.mrb[0].mxu0 %v812
    %v882 = vpop.f32.mrb[0].mxu0
    %v883 = vadd.f32 0.0, %v882
    %v884 = vpop.f32.mrb[0].mxu0
    %885 = vdwg.mxu0
    %886 = vrot.lane.b32.xlu0 %v137, 112
    %v887 = vpop.permute.xlu0 %886
    %888 = vrot.lane.b32.xlu0 %v137, 80
    %v889 = vpop.permute.xlu0 %888
    %v890 = vsel %vm144, %v887, 0
    %v892 = vsel %vm144, %v889, 0
    %894 = vmatprep.subr.mxu0 0.0
    %895 = vmatpush1.xpose.msra.mxu0 %v892
    %896 = vmatprep.subr.mxu0 0.0
    %897 = vmatpush1.xpose.msra.mxu0 0.0
    %898 = vmatprep.subr.mxu0 0.0
    %899 = vmatpush1.xpose.msra.mxu0 0.0
    %900 = vmatprep.subr.mxu0 0.0
    %901 = vmatpush1.xpose.msra.mxu0 0.0
    %902 = vmatprep.subr.mxu0 0.0
    %903 = vmatpush1.xpose.msra.mxu0 0.0
    %904 = vmatprep.subr.mxu0 0.0
    %905 = vmatpush1.xpose.msra.mxu0 0.0
    %906 = vmatprep.subr.mxu0 0.0
    %907 = vmatpush1.xpose.msra.mxu0 0.0
    %908 = vmatprep.subr.mxu0 0.0
    %909 = vmatpush1.xpose.msra.mxu0 0.0
    %910 = vmatprep.subr.mxu0 0.0
    %911 = vmatpush1.xpose.msra.mxu0 0.0
    %912 = vmatprep.subr.mxu0 0.0
    %913 = vmatpush1.xpose.msra.mxu0 0.0
    %914 = vmatprep.subr.mxu0 0.0
    %915 = vmatpush1.xpose.msra.mxu0 0.0
    %916 = vmatprep.subr.mxu0 0.0
    %917 = vmatpush1.xpose.msra.mxu0 0.0
    %918 = vmatprep.subr.mxu0 0.0
    %919 = vmatpush1.xpose.msra.mxu0 0.0
    %920 = vmatprep.subr.mxu0 0.0
    %921 = vmatpush1.xpose.msra.mxu0 0.0
    %922 = vmatprep.subr.mxu0 0.0
    %923 = vmatpush1.xpose.msra.mxu0 0.0
    %924 = vmatprep.subr.mxu0 0.0
    %925 = vmatpush1.xpose.msra.mxu0 0.0
    %926 = vmatprep.subr.mxu0 0.0
    %927 = vmatpush1.xpose.msra.mxu0 0.0
    %928 = vmatprep.subr.mxu0 0.0
    %929 = vmatpush1.xpose.msra.mxu0 0.0
    %930 = vmatprep.subr.mxu0 0.0
    %931 = vmatpush1.xpose.msra.mxu0 0.0
    %932 = vmatprep.subr.mxu0 0.0
    %933 = vmatpush1.xpose.msra.mxu0 0.0
    %934 = vmatprep.subr.mxu0 0.0
    %935 = vmatpush1.xpose.msra.mxu0 0.0
    %936 = vmatprep.subr.mxu0 0.0
    %937 = vmatpush1.xpose.msra.mxu0 0.0
    %938 = vmatprep.subr.mxu0 0.0
    %939 = vmatpush1.xpose.msra.mxu0 0.0
    %940 = vmatprep.subr.mxu0 0.0
    %941 = vmatpush1.xpose.msra.mxu0 0.0
    %942 = vmatprep.subr.mxu0 0.0
    %943 = vmatpush1.xpose.msra.mxu0 0.0
    %944 = vmatprep.subr.mxu0 0.0
    %945 = vmatpush1.xpose.msra.mxu0 0.0
    %946 = vmatprep.subr.mxu0 0.0
    %947 = vmatpush1.xpose.msra.mxu0 0.0
    %948 = vmatprep.subr.mxu0 0.0
    %949 = vmatpush1.xpose.msra.mxu0 0.0
    %950 = vmatprep.subr.mxu0 0.0
    %951 = vmatpush1.xpose.msra.mxu0 0.0
    %952 = vmatprep.subr.mxu0 0.0
    %953 = vmatpush1.xpose.msra.mxu0 0.0
    %954 = vmatprep.subr.mxu0 0.0
    %955 = vmatpush1.xpose.msra.mxu0 0.0
    %956 = vmatprep.subr.mxu0 0.0
    %957 = vmatpush1.xpose.msra.mxu0 0.0
    %958 = vmatprep.mubr.f32.mxu0 0.0
    %959 = vmatmul.mubr.f32.gmra.mrb[0].mxu0 %v890
    %v960 = vpop.f32.mrb[0].mxu0
    %v961 = vadd.f32 0.0, %v960
    %v962 = vpop.f32.mrb[0].mxu0
    %963 = vdwg.mxu0
    %v964 = vmul.f32 %v883, 0.17677669
    %v965 = vmul.f32 %v961, 0.17677669
    %v966 = vadd.f32 %v964, %v140
    %v967 = vadd.f32 %v965, %v140
    %v968 = vsel %vm144, %v966, -inf
    %969 = vmax.xlane.f32.xlu0 %v968
    %v970 = vpop.xlane.xlu0 %969
    %v971 = vsel %vm144, %v967, -inf
    %972 = vmax.xlane.f32.xlu0 %v971
    %v973 = vpop.xlane.xlu0 %972
    %v974 = vsub.f32 %v966, %v970
    %v975 = vsub.f32 %v967, %v973
    %v976 = vmul.f32 %v974, 1.442695
    %v977 = vpow.pop %v976
    %v978 = vmul.f32 %v975, 1.442695
    %v979 = vpow.pop %v978
    %v980 = vsel %vm144, %v977, 0.0
    %981 = vadd.xlane.f32.xlu0 %v980
    %v982 = vpop.xlane.xlu0 %981
    %v983 = vsel %vm144, %v979, 0.0
    %984 = vadd.xlane.f32.xlu0 %v983
    %v985 = vpop.xlane.xlu0 %984
    %v986 = vrcp.pop %v982
    %v987 = vrcp.pop %v985
    %v988 = vmul.f32 %v977, %v986
    %v989 = vmul.f32 %v979, %v987
    %990 = vrot.lane.b32.xlu0 %v134, 48
    %v991 = vpop.permute.xlu0 %990
    %v994 = vsel %vm144, %v988, 0
    %996 = vmatprep.subr.mxu0 0.0
    %997 = vmatpush1.msra.mxu0 %v991
    %998 = vmatprep.subr.mxu0 0.0
    %999 = vmatpush1.msra.mxu0 0.0
    %1000 = vmatprep.subr.mxu0 0.0
    %1001 = vmatpush1.msra.mxu0 0.0
    %1002 = vmatprep.subr.mxu0 0.0
    %1003 = vmatpush1.msra.mxu0 0.0
    %1004 = vmatprep.subr.mxu0 0.0
    %1005 = vmatpush1.msra.mxu0 0.0
    %1006 = vmatprep.subr.mxu0 0.0
    %1007 = vmatpush1.msra.mxu0 0.0
    %1008 = vmatprep.subr.mxu0 0.0
    %1009 = vmatpush1.msra.mxu0 0.0
    %1010 = vmatprep.subr.mxu0 0.0
    %1011 = vmatpush1.msra.mxu0 0.0
    %1012 = vmatprep.subr.mxu0 0.0
    %1013 = vmatpush1.msra.mxu0 0.0
    %1014 = vmatprep.subr.mxu0 0.0
    %1015 = vmatpush1.msra.mxu0 0.0
    %1016 = vmatprep.subr.mxu0 0.0
    %1017 = vmatpush1.msra.mxu0 0.0
    %1018 = vmatprep.subr.mxu0 0.0
    %1019 = vmatpush1.msra.mxu0 0.0
    %1020 = vmatprep.subr.mxu0 0.0
    %1021 = vmatpush1.msra.mxu0 0.0
    %1022 = vmatprep.subr.mxu0 0.0
    %1023 = vmatpush1.msra.mxu0 0.0
    %1024 = vmatprep.subr.mxu0 0.0
    %1025 = vmatpush1.msra.mxu0 0.0
    %1026 = vmatprep.subr.mxu0 0.0
    %1027 = vmatpush1.msra.mxu0 0.0
    %1028 = vmatprep.subr.mxu0 0.0
    %1029 = vmatpush1.msra.mxu0 0.0
    %1030 = vmatprep.subr.mxu0 0.0
    %1031 = vmatpush1.msra.mxu0 0.0
    %1032 = vmatprep.subr.mxu0 0.0
    %1033 = vmatpush1.msra.mxu0 0.0
    %1034 = vmatprep.subr.mxu0 0.0
    %1035 = vmatpush1.msra.mxu0 0.0
    %1036 = vmatprep.subr.mxu0 0.0
    %1037 = vmatpush1.msra.mxu0 0.0
    %1038 = vmatprep.subr.mxu0 0.0
    %1039 = vmatpush1.msra.mxu0 0.0
    %1040 = vmatprep.subr.mxu0 0.0
    %1041 = vmatpush1.msra.mxu0 0.0
    %1042 = vmatprep.subr.mxu0 0.0
    %1043 = vmatpush1.msra.mxu0 0.0
    %1044 = vmatprep.subr.mxu0 0.0
    %1045 = vmatpush1.msra.mxu0 0.0
    %1046 = vmatprep.subr.mxu0 0.0
    %1047 = vmatpush1.msra.mxu0 0.0
    %1048 = vmatprep.subr.mxu0 0.0
    %1049 = vmatpush1.msra.mxu0 0.0
    %1050 = vmatprep.subr.mxu0 0.0
    %1051 = vmatpush1.msra.mxu0 0.0
    %1052 = vmatprep.subr.mxu0 0.0
    %1053 = vmatpush1.msra.mxu0 0.0
    %1054 = vmatprep.subr.mxu0 0.0
    %1055 = vmatpush1.msra.mxu0 0.0
    %1056 = vmatprep.subr.mxu0 0.0
    %1057 = vmatpush1.msra.mxu0 0.0
    %1058 = vmatprep.subr.mxu0 0.0
    %1059 = vmatpush1.msra.mxu0 0.0
    %1060 = vmatprep.mubr.f32.mxu0 0.0
    %1061 = vmatmul.mubr.f32.gmra.mrb[0].mxu0 %v994
    %v1062 = vpop.f32.mrb[0].mxu0
    %v1063 = vadd.f32 0.0, %v1062
    %v1064 = vpop.f32.mrb[0].mxu0
    %1065 = vdwg.mxu0
    %1066 = vrot.lane.b32.xlu0 %v137, 48
    %v1067 = vpop.permute.xlu0 %1066
    %v1070 = vsel %vm144, %v989, 0
    %1072 = vmatprep.subr.mxu0 0.0
    %1073 = vmatpush1.msra.mxu0 %v1067
    %1074 = vmatprep.subr.mxu0 0.0
    %1075 = vmatpush1.msra.mxu0 0.0
    %1076 = vmatprep.subr.mxu0 0.0
    %1077 = vmatpush1.msra.mxu0 0.0
    %1078 = vmatprep.subr.mxu0 0.0
    %1079 = vmatpush1.msra.mxu0 0.0
    %1080 = vmatprep.subr.mxu0 0.0
    %1081 = vmatpush1.msra.mxu0 0.0
    %1082 = vmatprep.subr.mxu0 0.0
    %1083 = vmatpush1.msra.mxu0 0.0
    %1084 = vmatprep.subr.mxu0 0.0
    %1085 = vmatpush1.msra.mxu0 0.0
    %1086 = vmatprep.subr.mxu0 0.0
    %1087 = vmatpush1.msra.mxu0 0.0
    %1088 = vmatprep.subr.mxu0 0.0
    %1089 = vmatpush1.msra.mxu0 0.0
    %1090 = vmatprep.subr.mxu0 0.0
    %1091 = vmatpush1.msra.mxu0 0.0
    %1092 = vmatprep.subr.mxu0 0.0
    %1093 = vmatpush1.msra.mxu0 0.0
    %1094 = vmatprep.subr.mxu0 0.0
    %1095 = vmatpush1.msra.mxu0 0.0
    %1096 = vmatprep.subr.mxu0 0.0
    %1097 = vmatpush1.msra.mxu0 0.0
    %1098 = vmatprep.subr.mxu0 0.0
    %1099 = vmatpush1.msra.mxu0 0.0
    %1100 = vmatprep.subr.mxu0 0.0
    %1101 = vmatpush1.msra.mxu0 0.0
    %1102 = vmatprep.subr.mxu0 0.0
    %1103 = vmatpush1.msra.mxu0 0.0
    %1104 = vmatprep.subr.mxu0 0.0
    %1105 = vmatpush1.msra.mxu0 0.0
    %1106 = vmatprep.subr.mxu0 0.0
    %1107 = vmatpush1.msra.mxu0 0.0
    %1108 = vmatprep.subr.mxu0 0.0
    %1109 = vmatpush1.msra.mxu0 0.0
    %1110 = vmatprep.subr.mxu0 0.0
    %1111 = vmatpush1.msra.mxu0 0.0
    %1112 = vmatprep.subr.mxu0 0.0
    %1113 = vmatpush1.msra.mxu0 0.0
    %1114 = vmatprep.subr.mxu0 0.0
    %1115 = vmatpush1.msra.mxu0 0.0
    %1116 = vmatprep.subr.mxu0 0.0
    %1117 = vmatpush1.msra.mxu0 0.0
    %1118 = vmatprep.subr.mxu0 0.0
    %1119 = vmatpush1.msra.mxu0 0.0
    %1120 = vmatprep.subr.mxu0 0.0
    %1121 = vmatpush1.msra.mxu0 0.0
    %1122 = vmatprep.subr.mxu0 0.0
    %1123 = vmatpush1.msra.mxu0 0.0
    %1124 = vmatprep.subr.mxu0 0.0
    %1125 = vmatpush1.msra.mxu0 0.0
    %1126 = vmatprep.subr.mxu0 0.0
    %1127 = vmatpush1.msra.mxu0 0.0
    %1128 = vmatprep.subr.mxu0 0.0
    %1129 = vmatpush1.msra.mxu0 0.0
    %1130 = vmatprep.subr.mxu0 0.0
    %1131 = vmatpush1.msra.mxu0 0.0
    %1132 = vmatprep.subr.mxu0 0.0
    %1133 = vmatpush1.msra.mxu0 0.0
    %1134 = vmatprep.subr.mxu0 0.0
    %1135 = vmatpush1.msra.mxu0 0.0
    %1136 = vmatprep.mubr.f32.mxu0 0.0
    %1137 = vmatmul.mubr.f32.gmra.mrb[0].mxu0 %v1070
    %v1138 = vpop.f32.mrb[0].mxu0
    %v1139 = vadd.f32 0.0, %v1138
    %v1140 = vpop.f32.mrb[0].mxu0
    %1141 = vdwg.mxu0
    %1142 = vrot.lane.b32.xlu0 %v134, 104
    %v1143 = vpop.permute.xlu0 %1142
    %1144 = vrot.lane.b32.xlu0 %v134, 72
    %v1145 = vpop.permute.xlu0 %1144
    %v1146 = vsel %vm144, %v1143, 0
    %v1148 = vsel %vm144, %v1145, 0
    %1150 = vmatprep.subr.mxu0 0.0
    %1151 = vmatpush1.xpose.msra.mxu0 %v1148
    %1152 = vmatprep.subr.mxu0 0.0
    %1153 = vmatpush1.xpose.msra.mxu0 0.0
    %1154 = vmatprep.subr.mxu0 0.0
    %1155 = vmatpush1.xpose.msra.mxu0 0.0
    %1156 = vmatprep.subr.mxu0 0.0
    %1157 = vmatpush1.xpose.msra.mxu0 0.0
    %1158 = vmatprep.subr.mxu0 0.0
    %1159 = vmatpush1.xpose.msra.mxu0 0.0
    %1160 = vmatprep.subr.mxu0 0.0
    %1161 = vmatpush1.xpose.msra.mxu0 0.0
    %1162 = vmatprep.subr.mxu0 0.0
    %1163 = vmatpush1.xpose.msra.mxu0 0.0
    %1164 = vmatprep.subr.mxu0 0.0
    %1165 = vmatpush1.xpose.msra.mxu0 0.0
    %1166 = vmatprep.subr.mxu0 0.0
    %1167 = vmatpush1.xpose.msra.mxu0 0.0
    %1168 = vmatprep.subr.mxu0 0.0
    %1169 = vmatpush1.xpose.msra.mxu0 0.0
    %1170 = vmatprep.subr.mxu0 0.0
    %1171 = vmatpush1.xpose.msra.mxu0 0.0
    %1172 = vmatprep.subr.mxu0 0.0
    %1173 = vmatpush1.xpose.msra.mxu0 0.0
    %1174 = vmatprep.subr.mxu0 0.0
    %1175 = vmatpush1.xpose.msra.mxu0 0.0
    %1176 = vmatprep.subr.mxu0 0.0
    %1177 = vmatpush1.xpose.msra.mxu0 0.0
    %1178 = vmatprep.subr.mxu0 0.0
    %1179 = vmatpush1.xpose.msra.mxu0 0.0
    %1180 = vmatprep.subr.mxu0 0.0
    %1181 = vmatpush1.xpose.msra.mxu0 0.0
    %1182 = vmatprep.subr.mxu0 0.0
    %1183 = vmatpush1.xpose.msra.mxu0 0.0
    %1184 = vmatprep.subr.mxu0 0.0
    %1185 = vmatpush1.xpose.msra.mxu0 0.0
    %1186 = vmatprep.subr.mxu0 0.0
    %1187 = vmatpush1.xpose.msra.mxu0 0.0
    %1188 = vmatprep.subr.mxu0 0.0
    %1189 = vmatpush1.xpose.msra.mxu0 0.0
    %1190 = vmatprep.subr.mxu0 0.0
    %1191 = vmatpush1.xpose.msra.mxu0 0.0
    %1192 = vmatprep.subr.mxu0 0.0
    %1193 = vmatpush1.xpose.msra.mxu0 0.0
    %1194 = vmatprep.subr.mxu0 0.0
    %1195 = vmatpush1.xpose.msra.mxu0 0.0
    %1196 = vmatprep.subr.mxu0 0.0
    %1197 = vmatpush1.xpose.msra.mxu0 0.0
    %1198 = vmatprep.subr.mxu0 0.0
    %1199 = vmatpush1.xpose.msra.mxu0 0.0
    %1200 = vmatprep.subr.mxu0 0.0
    %1201 = vmatpush1.xpose.msra.mxu0 0.0
    %1202 = vmatprep.subr.mxu0 0.0
    %1203 = vmatpush1.xpose.msra.mxu0 0.0
    %1204 = vmatprep.subr.mxu0 0.0
    %1205 = vmatpush1.xpose.msra.mxu0 0.0
    %1206 = vmatprep.subr.mxu0 0.0
    %1207 = vmatpush1.xpose.msra.mxu0 0.0
    %1208 = vmatprep.subr.mxu0 0.0
    %1209 = vmatpush1.xpose.msra.mxu0 0.0
    %1210 = vmatprep.subr.mxu0 0.0
    %1211 = vmatpush1.xpose.msra.mxu0 0.0
    %1212 = vmatprep.subr.mxu0 0.0
    %1213 = vmatpush1.xpose.msra.mxu0 0.0
    %1214 = vmatprep.mubr.f32.mxu0 0.0
    %1215 = vmatmul.mubr.f32.gmra.mrb[0].mxu0 %v1146
    %v1216 = vpop.f32.mrb[0].mxu0
    %v1217 = vadd.f32 0.0, %v1216
    %v1218 = vpop.f32.mrb[0].mxu0
    %1219 = vdwg.mxu0
    %1220 = vrot.lane.b32.xlu0 %v137, 104
    %v1221 = vpop.permute.xlu0 %1220
    %1222 = vrot.lane.b32.xlu0 %v137, 72
    %v1223 = vpop.permute.xlu0 %1222
    %v1224 = vsel %vm144, %v1221, 0
    %v1226 = vsel %vm144, %v1223, 0
    %1228 = vmatprep.subr.mxu0 0.0
    %1229 = vmatpush1.xpose.msra.mxu0 %v1226
    %1230 = vmatprep.subr.mxu0 0.0
    %1231 = vmatpush1.xpose.msra.mxu0 0.0
    %1232 = vmatprep.subr.mxu0 0.0
    %1233 = vmatpush1.xpose.msra.mxu0 0.0
    %1234 = vmatprep.subr.mxu0 0.0
    %1235 = vmatpush1.xpose.msra.mxu0 0.0
    %1236 = vmatprep.subr.mxu0 0.0
    %1237 = vmatpush1.xpose.msra.mxu0 0.0
    %1238 = vmatprep.subr.mxu0 0.0
    %1239 = vmatpush1.xpose.msra.mxu0 0.0
    %1240 = vmatprep.subr.mxu0 0.0
    %1241 = vmatpush1.xpose.msra.mxu0 0.0
    %1242 = vmatprep.subr.mxu0 0.0
    %1243 = vmatpush1.xpose.msra.mxu0 0.0
    %1244 = vmatprep.subr.mxu0 0.0
    %1245 = vmatpush1.xpose.msra.mxu0 0.0
    %1246 = vmatprep.subr.mxu0 0.0
    %1247 = vmatpush1.xpose.msra.mxu0 0.0
    %1248 = vmatprep.subr.mxu0 0.0
    %1249 = vmatpush1.xpose.msra.mxu0 0.0
    %1250 = vmatprep.subr.mxu0 0.0
    %1251 = vmatpush1.xpose.msra.mxu0 0.0
    %1252 = vmatprep.subr.mxu0 0.0
    %1253 = vmatpush1.xpose.msra.mxu0 0.0
    %1254 = vmatprep.subr.mxu0 0.0
    %1255 = vmatpush1.xpose.msra.mxu0 0.0
    %1256 = vmatprep.subr.mxu0 0.0
    %1257 = vmatpush1.xpose.msra.mxu0 0.0
    %1258 = vmatprep.subr.mxu0 0.0
    %1259 = vmatpush1.xpose.msra.mxu0 0.0
    %1260 = vmatprep.subr.mxu0 0.0
    %1261 = vmatpush1.xpose.msra.mxu0 0.0
    %1262 = vmatprep.subr.mxu0 0.0
    %1263 = vmatpush1.xpose.msra.mxu0 0.0
    %1264 = vmatprep.subr.mxu0 0.0
    %1265 = vmatpush1.xpose.msra.mxu0 0.0
    %1266 = vmatprep.subr.mxu0 0.0
    %1267 = vmatpush1.xpose.msra.mxu0 0.0
    %1268 = vmatprep.subr.mxu0 0.0
    %1269 = vmatpush1.xpose.msra.mxu0 0.0
    %1270 = vmatprep.subr.mxu0 0.0
    %1271 = vmatpush1.xpose.msra.mxu0 0.0
    %1272 = vmatprep.subr.mxu0 0.0
    %1273 = vmatpush1.xpose.msra.mxu0 0.0
    %1274 = vmatprep.subr.mxu0 0.0
    %1275 = vmatpush1.xpose.msra.mxu0 0.0
    %1276 = vmatprep.subr.mxu0 0.0
    %1277 = vmatpush1.xpose.msra.mxu0 0.0
    %1278 = vmatprep.subr.mxu0 0.0
    %1279 = vmatpush1.xpose.msra.mxu0 0.0
    %1280 = vmatprep.subr.mxu0 0.0
    %1281 = vmatpush1.xpose.msra.mxu0 0.0
    %1282 = vmatprep.subr.mxu0 0.0
    %1283 = vmatpush1.xpose.msra.mxu0 0.0
    %1284 = vmatprep.subr.mxu0 0.0
    %1285 = vmatpush1.xpose.msra.mxu0 0.0
    %1286 = vmatprep.subr.mxu0 0.0
    %1287 = vmatpush1.xpose.msra.mxu0 0.0
    %1288 = vmatprep.subr.mxu0 0.0
    %1289 = vmatpush1.xpose.msra.mxu0 0.0
    %1290 = vmatprep.subr.mxu0 0.0
    %1291 = vmatpush1.xpose.msra.mxu0 0.0
    %1292 = vmatprep.mubr.f32.mxu0 0.0
    %1293 = vmatmul.mubr.f32.gmra.mrb[0].mxu0 %v1224
    %v1294 = vpop.f32.mrb[0].mxu0
    %v1295 = vadd.f32 0.0, %v1294
    %v1296 = vpop.f32.mrb[0].mxu0
    %1297 = vdwg.mxu0
    %v1298 = vmul.f32 %v1217, 0.17677669
    %v1299 = vmul.f32 %v1295, 0.17677669
    %v1300 = vadd.f32 %v1298, %v140
    %v1301 = vadd.f32 %v1299, %v140
    %v1302 = vsel %vm144, %v1300, -inf
    %1303 = vmax.xlane.f32.xlu0 %v1302
    %v1304 = vpop.xlane.xlu0 %1303
    %v1305 = vsel %vm144, %v1301, -inf
    %1306 = vmax.xlane.f32.xlu0 %v1305
    %v1307 = vpop.xlane.xlu0 %1306
    %v1308 = vsub.f32 %v1300, %v1304
    %v1309 = vsub.f32 %v1301, %v1307
    %v1310 = vmul.f32 %v1308, 1.442695
    %v1311 = vpow.pop %v1310
    %v1312 = vmul.f32 %v1309, 1.442695
    %v1313 = vpow.pop %v1312
    %v1314 = vsel %vm144, %v1311, 0.0
    %1315 = vadd.xlane.f32.xlu0 %v1314
    %v1316 = vpop.xlane.xlu0 %1315
    %v1317 = vsel %vm144, %v1313, 0.0
    %1318 = vadd.xlane.f32.xlu0 %v1317
    %v1319 = vpop.xlane.xlu0 %1318
    %v1320 = vrcp.pop %v1316
    %v1321 = vrcp.pop %v1319
    %v1322 = vmul.f32 %v1311, %v1320
    %v1323 = vmul.f32 %v1313, %v1321
    %1324 = vrot.lane.b32.xlu0 %v134, 40
    %v1325 = vpop.permute.xlu0 %1324
    %v1328 = vsel %vm144, %v1322, 0
    %1330 = vmatprep.subr.mxu0 0.0
    %1331 = vmatpush1.msra.mxu0 %v1325
    %1332 = vmatprep.subr.mxu0 0.0
    %1333 = vmatpush1.msra.mxu0 0.0
    %1334 = vmatprep.subr.mxu0 0.0
    %1335 = vmatpush1.msra.mxu0 0.0
    %1336 = vmatprep.subr.mxu0 0.0
    %1337 = vmatpush1.msra.mxu0 0.0
    %1338 = vmatprep.subr.mxu0 0.0
    %1339 = vmatpush1.msra.mxu0 0.0
    %1340 = vmatprep.subr.mxu0 0.0
    %1341 = vmatpush1.msra.mxu0 0.0
    %1342 = vmatprep.subr.mxu0 0.0
    %1343 = vmatpush1.msra.mxu0 0.0
    %1344 = vmatprep.subr.mxu0 0.0
    %1345 = vmatpush1.msra.mxu0 0.0
    %1346 = vmatprep.subr.mxu0 0.0
    %1347 = vmatpush1.msra.mxu0 0.0
    %1348 = vmatprep.subr.mxu0 0.0
    %1349 = vmatpush1.msra.mxu0 0.0
    %1350 = vmatprep.subr.mxu0 0.0
    %1351 = vmatpush1.msra.mxu0 0.0
    %1352 = vmatprep.subr.mxu0 0.0
    %1353 = vmatpush1.msra.mxu0 0.0
    %1354 = vmatprep.subr.mxu0 0.0
    %1355 = vmatpush1.msra.mxu0 0.0
    %1356 = vmatprep.subr.mxu0 0.0
    %1357 = vmatpush1.msra.mxu0 0.0
    %1358 = vmatprep.subr.mxu0 0.0
    %1359 = vmatpush1.msra.mxu0 0.0
    %1360 = vmatprep.subr.mxu0 0.0
    %1361 = vmatpush1.msra.mxu0 0.0
    %1362 = vmatprep.subr.mxu0 0.0
    %1363 = vmatpush1.msra.mxu0 0.0
    %1364 = vmatprep.subr.mxu0 0.0
    %1365 = vmatpush1.msra.mxu0 0.0
    %1366 = vmatprep.subr.mxu0 0.0
    %1367 = vmatpush1.msra.mxu0 0.0
    %1368 = vmatprep.subr.mxu0 0.0
    %1369 = vmatpush1.msra.mxu0 0.0
    %1370 = vmatprep.subr.mxu0 0.0
    %1371 = vmatpush1.msra.mxu0 0.0
    %1372 = vmatprep.subr.mxu0 0.0
    %1373 = vmatpush1.msra.mxu0 0.0
    %1374 = vmatprep.subr.mxu0 0.0
    %1375 = vmatpush1.msra.mxu0 0.0
    %1376 = vmatprep.subr.mxu0 0.0
    %1377 = vmatpush1.msra.mxu0 0.0
    %1378 = vmatprep.subr.mxu0 0.0
    %1379 = vmatpush1.msra.mxu0 0.0
    %1380 = vmatprep.subr.mxu0 0.0
    %1381 = vmatpush1.msra.mxu0 0.0
    %1382 = vmatprep.subr.mxu0 0.0
    %1383 = vmatpush1.msra.mxu0 0.0
    %1384 = vmatprep.subr.mxu0 0.0
    %1385 = vmatpush1.msra.mxu0 0.0
    %1386 = vmatprep.subr.mxu0 0.0
    %1387 = vmatpush1.msra.mxu0 0.0
    %1388 = vmatprep.subr.mxu0 0.0
    %1389 = vmatpush1.msra.mxu0 0.0
    %1390 = vmatprep.subr.mxu0 0.0
    %1391 = vmatpush1.msra.mxu0 0.0
    %1392 = vmatprep.subr.mxu0 0.0
    %1393 = vmatpush1.msra.mxu0 0.0
    %1394 = vmatprep.mubr.f32.mxu0 0.0
    %1395 = vmatmul.mubr.f32.gmra.mrb[0].mxu0 %v1328
    %v1396 = vpop.f32.mrb[0].mxu0
    %v1397 = vadd.f32 0.0, %v1396
    %v1398 = vpop.f32.mrb[0].mxu0
    %1399 = vdwg.mxu0
    %1400 = vrot.lane.b32.xlu0 %v137, 40
    %v1401 = vpop.permute.xlu0 %1400
    %v1404 = vsel %vm144, %v1323, 0
    %1406 = vmatprep.subr.mxu0 0.0
    %1407 = vmatpush1.msra.mxu0 %v1401
    %1408 = vmatprep.subr.mxu0 0.0
    %1409 = vmatpush1.msra.mxu0 0.0
    %1410 = vmatprep.subr.mxu0 0.0
    %1411 = vmatpush1.msra.mxu0 0.0
    %1412 = vmatprep.subr.mxu0 0.0
    %1413 = vmatpush1.msra.mxu0 0.0
    %1414 = vmatprep.subr.mxu0 0.0
    %1415 = vmatpush1.msra.mxu0 0.0
    %1416 = vmatprep.subr.mxu0 0.0
    %1417 = vmatpush1.msra.mxu0 0.0
    %1418 = vmatprep.subr.mxu0 0.0
    %1419 = vmatpush1.msra.mxu0 0.0
    %1420 = vmatprep.subr.mxu0 0.0
    %1421 = vmatpush1.msra.mxu0 0.0
    %1422 = vmatprep.subr.mxu0 0.0
    %1423 = vmatpush1.msra.mxu0 0.0
    %1424 = vmatprep.subr.mxu0 0.0
    %1425 = vmatpush1.msra.mxu0 0.0
    %1426 = vmatprep.subr.mxu0 0.0
    %1427 = vmatpush1.msra.mxu0 0.0
    %1428 = vmatprep.subr.mxu0 0.0
    %1429 = vmatpush1.msra.mxu0 0.0
    %1430 = vmatprep.subr.mxu0 0.0
    %1431 = vmatpush1.msra.mxu0 0.0
    %1432 = vmatprep.subr.mxu0 0.0
    %1433 = vmatpush1.msra.mxu0 0.0
    %1434 = vmatprep.subr.mxu0 0.0
    %1435 = vmatpush1.msra.mxu0 0.0
    %1436 = vmatprep.subr.mxu0 0.0
    %1437 = vmatpush1.msra.mxu0 0.0
    %1438 = vmatprep.subr.mxu0 0.0
    %1439 = vmatpush1.msra.mxu0 0.0
    %1440 = vmatprep.subr.mxu0 0.0
    %1441 = vmatpush1.msra.mxu0 0.0
    %1442 = vmatprep.subr.mxu0 0.0
    %1443 = vmatpush1.msra.mxu0 0.0
    %1444 = vmatprep.subr.mxu0 0.0
    %1445 = vmatpush1.msra.mxu0 0.0
    %1446 = vmatprep.subr.mxu0 0.0
    %1447 = vmatpush1.msra.mxu0 0.0
    %1448 = vmatprep.subr.mxu0 0.0
    %1449 = vmatpush1.msra.mxu0 0.0
    %1450 = vmatprep.subr.mxu0 0.0
    %1451 = vmatpush1.msra.mxu0 0.0
    %1452 = vmatprep.subr.mxu0 0.0
    %1453 = vmatpush1.msra.mxu0 0.0
    %1454 = vmatprep.subr.mxu0 0.0
    %1455 = vmatpush1.msra.mxu0 0.0
    %1456 = vmatprep.subr.mxu0 0.0
    %1457 = vmatpush1.msra.mxu0 0.0
    %1458 = vmatprep.subr.mxu0 0.0
    %1459 = vmatpush1.msra.mxu0 0.0
    %1460 = vmatprep.subr.mxu0 0.0
    %1461 = vmatpush1.msra.mxu0 0.0
    %1462 = vmatprep.subr.mxu0 0.0
    %1463 = vmatpush1.msra.mxu0 0.0
    %1464 = vmatprep.subr.mxu0 0.0
    %1465 = vmatpush1.msra.mxu0 0.0
    %1466 = vmatprep.subr.mxu0 0.0
    %1467 = vmatpush1.msra.mxu0 0.0
    %1468 = vmatprep.subr.mxu0 0.0
    %1469 = vmatpush1.msra.mxu0 0.0
    %1470 = vmatprep.mubr.f32.mxu0 0.0
    %1471 = vmatmul.mubr.f32.gmra.mrb[0].mxu0 %v1404
    %v1472 = vpop.f32.mrb[0].mxu0
    %v1473 = vadd.f32 0.0, %v1472
    %v1474 = vpop.f32.mrb[0].mxu0
    %1475 = vdwg.mxu0
    %1478 = vrot.lane.b32.xlu0 %v729, 8
    %v1479 = vpop.permute.xlu0 %1478
    %1480 = vrot.lane.b32.xlu0 %v805, 8
    %v1481 = vpop.permute.xlu0 %1480
    %1486 = vrot.lane.b32.xlu0 %v1063, 16
    %v1487 = vpop.permute.xlu0 %1486
    %1488 = vrot.lane.b32.xlu0 %v1139, 16
    %v1489 = vpop.permute.xlu0 %1488
    %1494 = vrot.lane.b32.xlu0 %v1397, 24
    %v1495 = vpop.permute.xlu0 %1494
    %1496 = vrot.lane.b32.xlu0 %v1473, 24
    %v1497 = vpop.permute.xlu0 %1496
    %v1500 = vsel %vm144, %v395, %v1479
    %v1501 = vsel %vm144, %v471, %v1481
    %vm1502 = vcmask 130048
    %v1503 = vsel %vm1502, %v1500, %v1487
    %v1504 = vsel %vm1502, %v1501, %v1489
    %vm1505 = vcmask 195584
    %v1506 = vsel %vm1505, %v1503, %v1495
    %v1507 = vsel %vm1505, %v1504, %v1497
    %v1508 = vpack.c.bf16 %v1507, %v1506
    %v1509 = vld [vmem:[%s5] sm:$0xf]
    %v1510 = vld [vmem:[%s5 + $0x4] sm:$0xf]
    %v1511 = vld [vmem:[%s5 + $0x8] sm:$0xf]
    %v1512 = vld [vmem:[%s5 + $0xc] sm:$0xf]
    %v1513 = vlaneseq
    %v1514 = vshrl.u32 %v1513, 7
    %v1515 = vsub.s32 0, %v1514
    %v1516 = vrot.slane %v37, %v1515
    %v1521 = vunpack.c.l.b16 %v1509
    %v1522 = vunpack.c.l.b16 %v1510
    %v1523 = vunpack.c.l.b16 %v1511
    %v1524 = vunpack.c.l.b16 %v1512
    %v1525 = vpack.c.b16 %v1522, %v1521
    %v1526 = vpack.c.b16 %v1524, %v1523
    %v1530 = vsel %vm39, %v1508, 0
    %1532 = vmatprep.subr.bf16.mxu0 0
    %1533 = vmatpush1.bf16.msra.mxu0 %v1525
    %1534 = vmatprep.subr.bf16.mxu0 0
    %1535 = vmatpush1.bf16.msra.mxu0 %v1526
    %1536 = vmatprep.subr.bf16.mxu0 0
    %1537 = vmatpush1.bf16.msra.mxu0 0
    %1538 = vmatprep.subr.bf16.mxu0 0
    %1539 = vmatpush1.bf16.msra.mxu0 0
    %1540 = vmatprep.subr.bf16.mxu0 0
    %1541 = vmatpush1.bf16.msra.mxu0 0
    %1542 = vmatprep.subr.bf16.mxu0 0
    %1543 = vmatpush1.bf16.msra.mxu0 0
    %1544 = vmatprep.subr.bf16.mxu0 0
    %1545 = vmatpush1.bf16.msra.mxu0 0
    %1546 = vmatprep.subr.bf16.mxu0 0
    %1547 = vmatpush1.bf16.msra.mxu0 0
    %1548 = vmatprep.subr.bf16.mxu0 0
    %1549 = vmatpush1.bf16.msra.mxu0 0
    %1550 = vmatprep.subr.bf16.mxu0 0
    %1551 = vmatpush1.bf16.msra.mxu0 0
    %1552 = vmatprep.subr.bf16.mxu0 0
    %1553 = vmatpush1.bf16.msra.mxu0 0
    %1554 = vmatprep.subr.bf16.mxu0 0
    %1555 = vmatpush1.bf16.msra.mxu0 0
    %1556 = vmatprep.subr.bf16.mxu0 0
    %1557 = vmatpush1.bf16.msra.mxu0 0
    %1558 = vmatprep.subr.bf16.mxu0 0
    %1559 = vmatpush1.bf16.msra.mxu0 0
    %1560 = vmatprep.subr.bf16.mxu0 0
    %1561 = vmatpush1.bf16.msra.mxu0 0
    %1562 = vmatprep.subr.bf16.mxu0 0
    %1563 = vmatpush1.bf16.msra.mxu0 0
    %1564 = vmatprep.mubr.bf16.mxu0 0
    %1565 = vmatmul.mubr.bf16.gmra.mrb[0].mxu0 %v1530
    %v1566 = vpop.f32.mrb[0].mxu0
    %v1567 = vadd.f32 %v1516, %v1566
    %v1568 = vpop.f32.mrb[0].mxu0
    %v1569 = vpop.f32.mrb[0].mxu0
    %v1570 = vadd.f32 %v1516, %v1569
    %v1571 = vpop.f32.mrb[0].mxu0
    %1572 = vdwg.mxu0
    %v1573 = vadd.f32 %v31, %v1567
    %v1574 = vadd.f32 %v32, %v1570
    %v1575 = vsel %vm39, %v1573, 0.0
    %1576 = vadd.xlane.f32.xlu0 %v1575
    %v1577 = vpop.xlane.xlu0 %1576
    %v1578 = vsel %vm39, %v1574, 0.0
    %1579 = vadd.xlane.f32.xlu0 %v1578
    %v1580 = vpop.xlane.xlu0 %1579
    %v1581 = vmul.f32 %v1577, %v46
    %v1582 = vmul.f32 %v1580, %v46
    %v1583 = vsub.f32 %v1573, %v1581
    %v1584 = vsub.f32 %v1574, %v1582
    %v1585 = vmul.f32 %v1583, %v1583
    %v1586 = vmul.f32 %v1584, %v1584
    %v1587 = vsel %vm39, %v1585, 0.0
    %1588 = vadd.xlane.f32.xlu0 %v1587
    %v1589 = vpop.xlane.xlu0 %1588
    %v1590 = vsel %vm39, %v1586, 0.0
    %1591 = vadd.xlane.f32.xlu0 %v1590
    %v1592 = vpop.xlane.xlu0 %1591
    %v1593 = vmul.f32 %v1589, %v46
    %v1594 = vmul.f32 %v1592, %v46
    %v1595 = vadd.f32 %v1593, 1e-05
    %v1596 = vadd.f32 %v1594, 1e-05
    %v1597 = vrsqrt.pop %v1595
    %v1598 = vrsqrt.pop %v1596
    %v1599 = vmul.f32 %v1583, %v1597
    %v1600 = vmul.f32 %v1584, %v1598
    %v1601 = vlaneseq
    %v1602 = vshrl.u32 %v1601, 7
    %v1603 = vsub.s32 0, %v1602
    %v1604 = vrot.slane %v35, %v1603
    %v1605 = vmul.f32 %v1599, %v1604
    %v1606 = vmul.f32 %v1600, %v1604
    %v1607 = vlaneseq
    %v1608 = vshrl.u32 %v1607, 7
    %v1609 = vsub.s32 0, %v1608
    %v1610 = vrot.slane %v36, %v1609
    %v1611 = vadd.f32 %v1605, %v1610
    %v1612 = vadd.f32 %v1606, %v1610
    %v1613 = vpack.c.bf16 %v1612, %v1611
    %v1614 = vld [vmem:[%s6] sm:$0xf]
    %v1615 = vld [vmem:[%s6 + $0x4] sm:$0xf]
    %v1616 = vld [vmem:[%s6 + $0x8] sm:$0xf]
    %v1617 = vld [vmem:[%s6 + $0xc] sm:$0xf]
    %v1618 = vld [vmem:[%s2] sm:$0x1]
    %v1620 = vlaneseq
    %v1621 = vshrl.u32 %v1620, 7
    %v1622 = vsub.s32 0, %v1621
    %v1623 = vrot.slane %v1618, %v1622
    %v1629 = vunpack.c.l.b16 %v1614
    %v1630 = vunpack.c.l.b16 %v1615
    %v1631 = vunpack.c.l.b16 %v1616
    %v1632 = vunpack.c.l.b16 %v1617
    %v1633 = vpack.c.b16 %v1630, %v1629
    %v1634 = vpack.c.b16 %v1632, %v1631
    %v1638 = vsel %vm39, %v1613, 0
    %1640 = vmatprep.subr.bf16.mxu0 0
    %1641 = vmatpush1.bf16.msra.mxu0 %v1633
    %1642 = vmatprep.subr.bf16.mxu0 0
    %1643 = vmatpush1.bf16.msra.mxu0 %v1634
    %1644 = vmatprep.subr.bf16.mxu0 0
    %1645 = vmatpush1.bf16.msra.mxu0 0
    %1646 = vmatprep.subr.bf16.mxu0 0
    %1647 = vmatpush1.bf16.msra.mxu0 0
    %1648 = vmatprep.subr.bf16.mxu0 0
    %1649 = vmatpush1.bf16.msra.mxu0 0
    %1650 = vmatprep.subr.bf16.mxu0 0
    %1651 = vmatpush1.bf16.msra.mxu0 0
    %1652 = vmatprep.subr.bf16.mxu0 0
    %1653 = vmatpush1.bf16.msra.mxu0 0
    %1654 = vmatprep.subr.bf16.mxu0 0
    %1655 = vmatpush1.bf16.msra.mxu0 0
    %1656 = vmatprep.subr.bf16.mxu0 0
    %1657 = vmatpush1.bf16.msra.mxu0 0
    %1658 = vmatprep.subr.bf16.mxu0 0
    %1659 = vmatpush1.bf16.msra.mxu0 0
    %1660 = vmatprep.subr.bf16.mxu0 0
    %1661 = vmatpush1.bf16.msra.mxu0 0
    %1662 = vmatprep.subr.bf16.mxu0 0
    %1663 = vmatpush1.bf16.msra.mxu0 0
    %1664 = vmatprep.subr.bf16.mxu0 0
    %1665 = vmatpush1.bf16.msra.mxu0 0
    %1666 = vmatprep.subr.bf16.mxu0 0
    %1667 = vmatpush1.bf16.msra.mxu0 0
    %1668 = vmatprep.subr.bf16.mxu0 0
    %1669 = vmatpush1.bf16.msra.mxu0 0
    %1670 = vmatprep.subr.bf16.mxu0 0
    %1671 = vmatpush1.bf16.msra.mxu0 0
    %1672 = vmatprep.mubr.bf16.mxu0 0
    %1673 = vmatmul.mubr.bf16.gmra.mrb[0].mxu0 %v1638
    %v1674 = vpop.f32.mrb[0].mxu0
    %v1675 = vadd.f32 %v1623, %v1674
    %v1676 = vpop.f32.mrb[0].mxu0
    %v1677 = vpop.f32.mrb[0].mxu0
    %v1678 = vadd.f32 %v1623, %v1677
    %v1679 = vpop.f32.mrb[0].mxu0
    %1680 = vdwg.mxu0
    %v1681 = vmax.f32 %v1675, 0.0
    %v1682 = vmax.f32 %v1678, 0.0
    %v1683 = vpack.c.bf16 %v1682, %v1681
    %v1684 = vld [vmem:[%s7] sm:$0xf]
    %v1685 = vld [vmem:[%s7 + $0x4] sm:$0xf]
    %v1686 = vld [vmem:[%s7 + $0x8] sm:$0xf]
    %v1687 = vld [vmem:[%s7 + $0xc] sm:$0xf]
    %v1688 = vld [vmem:[%s7 + $0x10] sm:$0xf]
    %v1689 = vld [vmem:[%s7 + $0x14] sm:$0xf]
    %v1690 = vld [vmem:[%s7 + $0x18] sm:$0xf]
    %v1691 = vld [vmem:[%s7 + $0x1c] sm:$0xf]
    %v1692 = vld [vmem:[%s7 + $0x20] sm:$0xf]
    %v1693 = vld [vmem:[%s7 + $0x24] sm:$0xf]
    %v1694 = vld [vmem:[%s7 + $0x28] sm:$0xf]
    %v1695 = vld [vmem:[%s7 + $0x2c] sm:$0xf]
    %v1696 = vld [vmem:[%s7 + $0x30] sm:$0xf]
    %v1697 = vld [vmem:[%s7 + $0x34] sm:$0xf]
    %v1698 = vld [vmem:[%s7 + $0x38] sm:$0xf]
    %v1699 = vld [vmem:[%s7 + $0x3c] sm:$0xf]
    %v1700 = vlaneseq
    %v1701 = vshrl.u32 %v1700, 7
    %v1702 = vsub.s32 0, %v1701
    %v1703 = vrot.slane %v38, %v1702
    %v1720 = vunpack.c.l.b16 %v1684
    %v1721 = vunpack.c.l.b16 %v1685
    %v1722 = vunpack.c.l.b16 %v1686
    %v1723 = vunpack.c.l.b16 %v1687
    %v1724 = vunpack.c.l.b16 %v1688
    %v1725 = vunpack.c.l.b16 %v1689
    %v1726 = vunpack.c.l.b16 %v1690
    %v1727 = vunpack.c.l.b16 %v1691
    %v1728 = vunpack.c.l.b16 %v1692
    %v1729 = vunpack.c.l.b16 %v1693
    %v1730 = vunpack.c.l.b16 %v1694
    %v1731 = vunpack.c.l.b16 %v1695
    %v1732 = vunpack.c.l.b16 %v1696
    %v1733 = vunpack.c.l.b16 %v1697
    %v1734 = vunpack.c.l.b16 %v1698
    %v1735 = vunpack.c.l.b16 %v1699
    %v1736 = vpack.c.b16 %v1721, %v1720
    %v1737 = vpack.c.b16 %v1723, %v1722
    %v1738 = vpack.c.b16 %v1725, %v1724
    %v1739 = vpack.c.b16 %v1727, %v1726
    %v1740 = vpack.c.b16 %v1729, %v1728
    %v1741 = vpack.c.b16 %v1731, %v1730
    %v1742 = vpack.c.b16 %v1733, %v1732
    %v1743 = vpack.c.b16 %v1735, %v1734
    %1752 = vmatprep.subr.bf16.mxu0 0
    %1753 = vmatpush1.bf16.msra.mxu0 %v1736
    %1754 = vmatprep.subr.bf16.mxu0 0
    %1755 = vmatpush1.bf16.msra.mxu0 %v1737
    %1756 = vmatprep.subr.bf16.mxu0 0
    %1757 = vmatpush1.bf16.msra.mxu0 %v1738
    %1758 = vmatprep.subr.bf16.mxu0 0
    %1759 = vmatpush1.bf16.msra.mxu0 %v1739
    %1760 = vmatprep.subr.bf16.mxu0 0
    %1761 = vmatpush1.bf16.msra.mxu0 %v1740
    %1762 = vmatprep.subr.bf16.mxu0 0
    %1763 = vmatpush1.bf16.msra.mxu0 %v1741
    %1764 = vmatprep.subr.bf16.mxu0 0
    %1765 = vmatpush1.bf16.msra.mxu0 %v1742
    %1766 = vmatprep.subr.bf16.mxu0 0
    %1767 = vmatpush1.bf16.msra.mxu0 %v1743
    %1768 = vmatprep.subr.bf16.mxu0 0
    %1769 = vmatpush1.bf16.msra.mxu0 0
    %1770 = vmatprep.subr.bf16.mxu0 0
    %1771 = vmatpush1.bf16.msra.mxu0 0
    %1772 = vmatprep.subr.bf16.mxu0 0
    %1773 = vmatpush1.bf16.msra.mxu0 0
    %1774 = vmatprep.subr.bf16.mxu0 0
    %1775 = vmatpush1.bf16.msra.mxu0 0
    %1776 = vmatprep.subr.bf16.mxu0 0
    %1777 = vmatpush1.bf16.msra.mxu0 0
    %1778 = vmatprep.subr.bf16.mxu0 0
    %1779 = vmatpush1.bf16.msra.mxu0 0
    %1780 = vmatprep.subr.bf16.mxu0 0
    %1781 = vmatpush1.bf16.msra.mxu0 0
    %1782 = vmatprep.subr.bf16.mxu0 0
    %1783 = vmatpush1.bf16.msra.mxu0 0
    %1784 = vmatprep.mubr.bf16.mxu0 0
    %1785 = vmatmul.mubr.bf16.gmra.mrb[0].mxu0 %v1683
    %v1786 = vpop.f32.mrb[0].mxu0
    %v1787 = vadd.f32 %v1703, %v1786
    %v1788 = vpop.f32.mrb[0].mxu0
    %v1789 = vpop.f32.mrb[0].mxu0
    %v1790 = vadd.f32 %v1703, %v1789
    %v1791 = vpop.f32.mrb[0].mxu0
    %1792 = vdwg.mxu0
    %v1793 = vadd.f32 %v1573, %v1787
    %v1794 = vadd.f32 %v1574, %v1790
    %1795 = vst.msk [vmem:[#allocation2] sm:$0xff] %vm39, %v1793
    %1796 = vst.msk [vmem:[#allocation2 + $0x8] sm:$0xff] %vm39, %v1794
    // Predicated region
    $region34: #{tpu_custom_call.1} parent=1 // pred_check
      _
    $region35: #{tpu_custom_call.1} parent=1 // pred_check_branch
      %1798 = sbr.rel (0) target = $region37
    $region36: #{tpu_custom_call.1} parent=1 // pred_region
      %s1800 = ssub.s32 256, 256
      %1801 = vsyncadd [#allocation3], %s1800
      %s1802 = sshll.u32 [#allocation2], 4
      %s1803 = int_to_ptr.vmem [resolvable:$true] %s1802
      %1808 = dma.vmem_to_hbm [thread:$0]  %s1803, 256, %s8, [#allocation3], 128, 128, 8
    $region37: #{tpu_custom_call.1} parent=1 // pred_fallthru
      _
    // Predicated region
    $region38: #{tpu_custom_call.1} parent=1 // pred_check
      _
    $region39: #{tpu_custom_call.1} parent=1 // pred_check_branch
      %1810 = sbr.rel (0) target = $region41
    $region40: #{tpu_custom_call.1} parent=1 // pred_region
      %1811 = dma.done [#allocation3], 256
    $region41: #{tpu_custom_call.1} parent=1 // pred_fallthru
      _
    %1812 = vsyncpa [#allocation3], 1

</llo_original>
